<compile_context>
chip_gen: v5e
topology: v5e:2x2
jax: 0.10.0
libtpu: 0.0.40
codegen_flags: <defaults>
</compile_context>

<pallas_src>
import functools
import math

import jax
import jax.numpy as jnp
from jax.experimental import pallas as pl
from jax.experimental.pallas import tpu as pltpu


# Rows of the packed (NUM_VEC_ROWS, E) bias / LayerNorm parameter table.
SA_BQ, SA_BK, SA_BV, SA_BO = 0, 1, 2, 3
CA_BQ, CA_BK, CA_BV, CA_BO = 4, 5, 6, 7
LN1_G, LN1_B, LN2_G, LN2_B, LN3_G, LN3_B = 8, 9, 10, 11, 12, 13
FF_B2 = 14
NUM_VEC_ROWS = 16  # padded to a multiple of 8 sublanes


# ---------------------------------------------------------------- helpers ---
def _layer_norm(x, gamma, beta, eps=1e-5):
    """f32 LayerNorm (biased variance, eps=1e-5) matching torch.nn.LayerNorm."""
    mean = jnp.mean(x, axis=-1, keepdims=True)
    var = jnp.mean(jnp.square(x - mean), axis=-1, keepdims=True)
    return (x - mean) * jax.lax.rsqrt(var + eps) * gamma + beta


def _attention(q, k, v, wo_ref, bo, num_heads, scale):
    """q, k, v: (S, E) f32 rows of a single batch element (biases added).
    wo_ref: (H, Dh, E) bf16 output-projection weight (leading-axis head index).
    Per-head MXU dots with bf16 operands and f32 accumulation; softmax in f32
    with the denominator reciprocal on the EUP; per-head accumulation into the
    output projection (no concat)."""
    S, E = q.shape
    Dh = E // num_heads
    q = q * scale                                   # scale hoisted out of loop
    acc = jnp.zeros((S, E), jnp.float32)
    for h in range(num_heads):                      # small static head count
        lo = h * Dh
        qh = q[:, lo:lo + Dh].astype(jnp.bfloat16)
        kh = k[:, lo:lo + Dh].astype(jnp.bfloat16)
        vh = v[:, lo:lo + Dh].astype(jnp.bfloat16)
        # Contract over the last dim of both operands: no materialized k.T.
        s = jax.lax.dot_general(
            qh, kh, dimension_numbers=(((1,), (1,)), ((), ())),
            preferred_element_type=jnp.float32)      # (S, S) f32
        s = s - jnp.max(s, axis=-1, keepdims=True)
        p = jnp.exp(s)
        p = p * pl.reciprocal(jnp.sum(p, axis=-1, keepdims=True), approx=True)
        ctx = jnp.dot(p.astype(jnp.bfloat16), vh,
                      preferred_element_type=jnp.float32)          # (S, Dh)
        acc = acc + jnp.dot(ctx.astype(jnp.bfloat16), wo_ref[h],
                            preferred_element_type=jnp.float32)    # (S, E)
    return acc + bo


# ----------------------------------------------------------------- kernel ---
def decoder_block_kernel(x_ref, sa_wqkv_ref, sa_wo_ref, ca_wqkv_ref, ca_wo_ref,
                         ff_w1_ref, ff_w2_ref, vecs_ref, ff_b1_ref,
                         out_ref, *, num_heads):
    _, S, E = x_ref.shape
    Dh = E // num_heads
    scale = 1.0 / math.sqrt(Dh)

    x = x_ref[0]                               # (S, E) f32, this batch element
    vecs = vecs_ref[...]                       # (16, E) f32, packed vectors
    row = lambda i: vecs[i:i + 1, :]           # (1, E) slice of the table

    x_bf = x.astype(jnp.bfloat16)

    # ---- self attention + residual + LN1 -----------------------------------
    qkv = jnp.dot(x_bf, sa_wqkv_ref[...],
                  preferred_element_type=jnp.float32)              # (S, 3E)
    q = qkv[:, 0:E] + row(SA_BQ)
    k = qkv[:, E:2 * E] + row(SA_BK)
    v = qkv[:, 2 * E:3 * E] + row(SA_BV)
    sa = _attention(q, k, v, sa_wo_ref, row(SA_BO), num_heads, scale)
    h1 = _layer_norm(sa + x, row(LN1_G), row(LN1_B))

    # ---- cross attention (query = h1, key/value = x) + residual + LN2 -------
    ca_w = ca_wqkv_ref[...]
    cq = jnp.dot(h1.astype(jnp.bfloat16), ca_w[:, 0:E],
                 preferred_element_type=jnp.float32) + row(CA_BQ)
    ckv = jnp.dot(x_bf, ca_w[:, E:3 * E],
                  preferred_element_type=jnp.float32)              # (S, 2E)
    ck = ckv[:, 0:E] + row(CA_BK)
    cv = ckv[:, E:2 * E] + row(CA_BV)
    ca = _attention(cq, ck, cv, ca_wo_ref, row(CA_BO), num_heads, scale)
    h2 = _layer_norm(ca + h1, row(LN2_G), row(LN2_B))

    # ---- feed forward (ReLU) + residual + LN3 --------------------------------
    f1 = jnp.dot(h2.astype(jnp.bfloat16), ff_w1_ref[...],
                 preferred_element_type=jnp.float32) + ff_b1_ref[...]
    f1 = jnp.maximum(f1, 0.0)
    f2 = jnp.dot(f1.astype(jnp.bfloat16), ff_w2_ref[...],
                 preferred_element_type=jnp.float32) + row(FF_B2)
    y = _layer_norm(f2 + h2, row(LN3_G), row(LN3_B))

    out_ref[...] = y.reshape(1, S, E)          # leading-dim expand, layout-free


# ---------------------------------------------------------------- wrapper ---
PARAM_ORDER = ("sa_wqkv", "sa_wo", "ca_wqkv", "ca_wo",
               "ff_w1", "ff_w2", "vecs", "ff_b1")


def decoder_transformer_block(x, params, num_heads):
    """x: (B, S, E) float32; params: dict of packed parameters."""
    B, S, E = x.shape
    F = params["ff_w1"].shape[1]
    Dh = E // num_heads
    args = [x] + [params[name] for name in PARAM_ORDER]

    # Per-batch grid; weight blocks have constant index_maps so they stay
    # resident in VMEM across grid steps.  All block shapes equal the full
    # array dims (satisfies the (8,128) rule via the full-dims exception).
    in_specs = [
        pl.BlockSpec((1, S, E), lambda b: (b, 0, 0)),              # x
        pl.BlockSpec((E, 3 * E), lambda b: (0, 0)),                # sa_wqkv
        pl.BlockSpec((num_heads, Dh, E), lambda b: (0, 0, 0)),     # sa_wo
        pl.BlockSpec((E, 3 * E), lambda b: (0, 0)),                # ca_wqkv
        pl.BlockSpec((num_heads, Dh, E), lambda b: (0, 0, 0)),     # ca_wo
        pl.BlockSpec((E, F), lambda b: (0, 0)),                    # ff_w1
        pl.BlockSpec((F, E), lambda b: (0, 0)),                    # ff_w2
        pl.BlockSpec((NUM_VEC_ROWS, E), lambda b: (0, 0)),         # vecs
        pl.BlockSpec((1, F), lambda b: (0, 0)),                    # ff_b1
    ]
    out_specs = pl.BlockSpec((1, S, E), lambda b: (b, 0, 0))

    kernel = functools.partial(decoder_block_kernel, num_heads=num_heads)
    return pl.pallas_call(
        kernel,
        out_shape=jax.ShapeDtypeStruct((B, S, E), jnp.float32),
        grid_spec=pltpu.PrefetchScalarGridSpec(
            num_scalar_prefetch=0,
            grid=(B,),
            in_specs=in_specs,
            out_specs=out_specs,
        ),
        compiler_params=pltpu.CompilerParams(
            # Batch axis is independent -> shard across both TCs on v7x.
            dimension_semantics=("parallel",),
            # Headroom below v7x's 64 MiB physical VMEM; re-derive at
            # production sizes (tile FFN / KV-tiled flash attention).
            vmem_limit_bytes=48 * 1024 * 1024,
        ),
    )(*args)


# ------------------------------------------------------------- param init ---
def init_params(key, E, F, H):
    """Deterministic synthetic parameters.  Linear weights are stored
    pre-transposed as (in, out) and cast to bf16; Q/K/V projection weights are
    packed into one (E, 3E) matrix per attention; output-projection weights are
    stored as (H, Dh, E) for free per-head leading-axis slicing; all (1, E)
    bias / LayerNorm vectors are packed into a single (16, E) f32 table."""
    Dh = E // H
    kw = jax.random.split(key, 8)
    std = 0.02

    def w(k, shape):
        return jax.random.normal(k, shape, jnp.float32) * std

    params = {
        "sa_wqkv": w(kw[0], (E, 3 * E)).astype(jnp.bfloat16),
        "sa_wo":   w(kw[1], (H, Dh, E)).astype(jnp.bfloat16),
        "ca_wqkv": w(kw[2], (E, 3 * E)).astype(jnp.bfloat16),
        "ca_wo":   w(kw[3], (H, Dh, E)).astype(jnp.bfloat16),
        "ff_w1":   w(kw[4], (E, F)).astype(jnp.bfloat16),
        "ff_w2":   w(kw[5], (F, E)).astype(jnp.bfloat16),
        "ff_b1":   w(kw[6], (1, F)),                       # f32
    }

    kv = jax.random.split(kw[7], NUM_VEC_ROWS)
    rows = [jnp.zeros((E,), jnp.float32)] * NUM_VEC_ROWS
    for r in (SA_BQ, SA_BK, SA_BV, SA_BO, CA_BQ, CA_BK, CA_BV, CA_BO, FF_B2):
        rows[r] = jax.random.normal(kv[r], (E,), jnp.float32) * std
    for g, b in ((LN1_G, LN1_B), (LN2_G, LN2_B), (LN3_G, LN3_B)):
        rows[g] = 1.0 + jax.random.normal(kv[g], (E,), jnp.float32) * 0.1
        rows[b] = jax.random.normal(kv[b], (E,), jnp.float32) * std
    params["vecs"] = jnp.stack(rows, axis=0)               # (16, E) f32
    return params


# ------------------------------------------------------- pure-JAX reference ---
def decoder_block_reference(x, params, num_heads):
    """f32 reference with PyTorch MultiheadAttention / LayerNorm semantics."""
    B, S, E = x.shape
    Dh = E // num_heads
    vecs = params["vecs"]
    f32 = lambda a: a.astype(jnp.float32)

    def layer_norm(h, g, b, eps=1e-5):
        m = jnp.mean(h, axis=-1, keepdims=True)
        v = jnp.mean(jnp.square(h - m), axis=-1, keepdims=True)
        return (h - m) * jax.lax.rsqrt(v + eps) * g + b

    def mha(q_in, kv_in, wqkv, bq, bk, bv, wo, bo):
        wqkv = f32(wqkv)
        wo = f32(wo).reshape(E, E)
        q = q_in @ wqkv[:, 0:E] + bq
        k = kv_in @ wqkv[:, E:2 * E] + bk
        v = kv_in @ wqkv[:, 2 * E:3 * E] + bv
        q = q.reshape(B, S, num_heads, Dh)
        k = k.reshape(B, S, num_heads, Dh)
        v = v.reshape(B, S, num_heads, Dh)
        s = jnp.einsum("bqhd,bkhd->bhqk", q, k) / math.sqrt(Dh)
        p = jax.nn.softmax(s, axis=-1)
        o = jnp.einsum("bhqk,bkhd->bqhd", p, v).reshape(B, S, E)
        return o @ wo + bo

    sa = mha(x, x, params["sa_wqkv"], vecs[SA_BQ], vecs[SA_BK], vecs[SA_BV],
             params["sa_wo"], vecs[SA_BO])
    h1 = layer_norm(sa + x, vecs[LN1_G], vecs[LN1_B])
    ca = mha(h1, x, params["ca_wqkv"], vecs[CA_BQ], vecs[CA_BK], vecs[CA_BV],
             params["ca_wo"], vecs[CA_BO])
    h2 = layer_norm(ca + h1, vecs[LN2_G], vecs[LN2_B])
    ff = jax.nn.relu(h2 @ f32(params["ff_w1"]) + params["ff_b1"][0])
    ff = ff @ f32(params["ff_w2"]) + vecs[FF_B2]
    return layer_norm(ff + h2, vecs[LN3_G], vecs[LN3_B])


# -------------------------------------------------------------------- main ---
if __name__ == "__main__":
    B, S, E, H, F = 2, 8, 32, 4, 64   # batch, seq, embed, heads, ff_dim

    key = jax.random.PRNGKey(0)
    kx, kp = jax.random.split(key)
    x = jax.random.normal(kx, (B, S, E), jnp.float32)
    params = init_params(kp, E, F, H)

    out = decoder_transformer_block(x, params, num_heads=H)
    out = jax.block_until_ready(out)

    assert out.shape == (B, S, E)
    assert bool(jnp.all(jnp.isfinite(out)))

    # Parity check against the f32 reference (kernel uses bf16 matmul operands
    # + approx reciprocal, so allow a loose tolerance).
    ref = decoder_block_reference(x, params, num_heads=H)
    err = float(jnp.max(jnp.abs(out - ref)))
    assert err < 5e-2, f"max abs error vs reference: {err}"

    print("KERNEL_OK")
</pallas_src>

<mosaic_0001>
module attributes {stable_mosaic.version = 11 : i64} {
  func.func @decoder_block_kernel(%arg0: i32, %arg1: memref<1x8x32xf32, #tpu.memory_space<vmem>>, %arg2: memref<32x96xbf16, #tpu.memory_space<vmem>>, %arg3: memref<4x8x32xbf16, #tpu.memory_space<vmem>>, %arg4: memref<32x96xbf16, #tpu.memory_space<vmem>>, %arg5: memref<4x8x32xbf16, #tpu.memory_space<vmem>>, %arg6: memref<32x64xbf16, #tpu.memory_space<vmem>>, %arg7: memref<64x32xbf16, #tpu.memory_space<vmem>>, %arg8: memref<16x32xf32, #tpu.memory_space<vmem>>, %arg9: memref<1x64xf32, #tpu.memory_space<vmem>>, %arg10: memref<1x8x32xf32, #tpu.memory_space<vmem>>) attributes {dimension_semantics = [#tpu.dimension_semantics<parallel>], iteration_bounds = array<i64: 2>, scalar_prefetch = 0 : i64, scratch_operands = 0 : i64, tpu.core_type = #tpu.core_type<tc>, window_params = [{transform_indices = @transform_0, window_bounds = array<i64: 1, 8, 32>}, {pipeline_mode = #tpu.pipeline_mode<synchronous>, transform_indices = @transform_1, window_bounds = array<i64: 32, 96>}, {pipeline_mode = #tpu.pipeline_mode<synchronous>, transform_indices = @transform_2, window_bounds = array<i64: 4, 8, 32>}, {pipeline_mode = #tpu.pipeline_mode<synchronous>, transform_indices = @transform_3, window_bounds = array<i64: 32, 96>}, {pipeline_mode = #tpu.pipeline_mode<synchronous>, transform_indices = @transform_4, window_bounds = array<i64: 4, 8, 32>}, {pipeline_mode = #tpu.pipeline_mode<synchronous>, transform_indices = @transform_5, window_bounds = array<i64: 32, 64>}, {pipeline_mode = #tpu.pipeline_mode<synchronous>, transform_indices = @transform_6, window_bounds = array<i64: 64, 32>}, {pipeline_mode = #tpu.pipeline_mode<synchronous>, transform_indices = @transform_7, window_bounds = array<i64: 16, 32>}, {pipeline_mode = #tpu.pipeline_mode<synchronous>, transform_indices = @transform_8, window_bounds = array<i64: 1, 64>}, {transform_indices = @transform_9, window_bounds = array<i64: 1, 8, 32>}]} {
    %c0 = arith.constant 0 : index
    %c0_0 = arith.constant 0 : index
    %c0_1 = arith.constant 0 : index
    %0 = vector.load %arg1[%c0, %c0_0, %c0_1] : memref<1x8x32xf32, #tpu.memory_space<vmem>>, vector<1x8x32xf32>
    %1 = vector.shape_cast %0 : vector<1x8x32xf32> to vector<8x32xf32>
    %c0_2 = arith.constant 0 : index
    %c0_3 = arith.constant 0 : index
    %2 = vector.load %arg8[%c0_2, %c0_3] : memref<16x32xf32, #tpu.memory_space<vmem>>, vector<16x32xf32>
    %3 = arith.truncf %1 : vector<8x32xf32> to vector<8x32xbf16>
    %c0_4 = arith.constant 0 : index
    %c0_5 = arith.constant 0 : index
    %4 = vector.load %arg2[%c0_4, %c0_5] : memref<32x96xbf16, #tpu.memory_space<vmem>>, vector<32x96xbf16>
    %cst = arith.constant dense<0.000000e+00> : vector<8x96xf32>
    %5 = tpu.matmul %3, %4, %cst {dimension_numbers = #tpu.dot_dimension_numbers<[1], [0], [0], [1], [0, 0, 1, 1], [], []>} : vector<8x32xbf16>, vector<32x96xbf16>, vector<8x96xf32> -> vector<8x96xf32>
    %6 = vector.extract_strided_slice %5 {offsets = [0, 0], sizes = [8, 32], strides = [1, 1]} : vector<8x96xf32> to vector<8x32xf32>
    %7 = vector.extract_strided_slice %2 {offsets = [0, 0], sizes = [1, 32], strides = [1, 1]} : vector<16x32xf32> to vector<1x32xf32>
    %8 = vector.broadcast %7 : vector<1x32xf32> to vector<8x32xf32>
    %9 = arith.addf %6, %8 : vector<8x32xf32>
    %10 = vector.extract_strided_slice %5 {offsets = [0, 32], sizes = [8, 32], strides = [1, 1]} : vector<8x96xf32> to vector<8x32xf32>
    %11 = vector.extract_strided_slice %2 {offsets = [1, 0], sizes = [1, 32], strides = [1, 1]} : vector<16x32xf32> to vector<1x32xf32>
    %12 = vector.broadcast %11 : vector<1x32xf32> to vector<8x32xf32>
    %13 = arith.addf %10, %12 : vector<8x32xf32>
    %14 = vector.extract_strided_slice %5 {offsets = [0, 64], sizes = [8, 32], strides = [1, 1]} : vector<8x96xf32> to vector<8x32xf32>
    %15 = vector.extract_strided_slice %2 {offsets = [2, 0], sizes = [1, 32], strides = [1, 1]} : vector<16x32xf32> to vector<1x32xf32>
    %16 = vector.broadcast %15 : vector<1x32xf32> to vector<8x32xf32>
    %17 = arith.addf %14, %16 : vector<8x32xf32>
    %18 = vector.extract_strided_slice %2 {offsets = [3, 0], sizes = [1, 32], strides = [1, 1]} : vector<16x32xf32> to vector<1x32xf32>
    %cst_6 = arith.constant 0.353553385 : f32
    %19 = vector.broadcast %cst_6 : f32 to vector<8x32xf32>
    %20 = arith.mulf %9, %19 : vector<8x32xf32>
    %cst_7 = arith.constant 0.000000e+00 : f32
    %21 = vector.broadcast %cst_7 : f32 to vector<8x32xf32>
    %22 = vector.extract_strided_slice %20 {offsets = [0, 0], sizes = [8, 8], strides = [1, 1]} : vector<8x32xf32> to vector<8x8xf32>
    %23 = arith.truncf %22 : vector<8x8xf32> to vector<8x8xbf16>
    %24 = vector.extract_strided_slice %13 {offsets = [0, 0], sizes = [8, 8], strides = [1, 1]} : vector<8x32xf32> to vector<8x8xf32>
    %25 = arith.truncf %24 : vector<8x8xf32> to vector<8x8xbf16>
    %26 = vector.extract_strided_slice %17 {offsets = [0, 0], sizes = [8, 8], strides = [1, 1]} : vector<8x32xf32> to vector<8x8xf32>
    %27 = arith.truncf %26 : vector<8x8xf32> to vector<8x8xbf16>
    %cst_8 = arith.constant dense<0.000000e+00> : vector<8x8xf32>
    %28 = tpu.matmul %23, %25, %cst_8 {dimension_numbers = #tpu.dot_dimension_numbers<[1], [1], [0], [0], [0, 0, 1, 0], [], []>} : vector<8x8xbf16>, vector<8x8xbf16>, vector<8x8xf32> -> vector<8x8xf32>
    %cst_9 = arith.constant dense<0xFF800000> : vector<8xf32>
    %29 = vector.multi_reduction <maximumf>, %28, %cst_9 [1] : vector<8x8xf32> to vector<8xf32>
    %30 = vector.shape_cast %29 : vector<8xf32> to vector<8x1xf32>
    %31 = vector.broadcast %30 : vector<8x1xf32> to vector<8x8xf32>
    %32 = arith.subf %28, %31 : vector<8x8xf32>
    %33 = math.exp %32 : vector<8x8xf32>
    %cst_10 = arith.constant dense<0.000000e+00> : vector<8xf32>
    %34 = vector.multi_reduction <add>, %33, %cst_10 [1] : vector<8x8xf32> to vector<8xf32>
    %35 = vector.shape_cast %34 : vector<8xf32> to vector<8x1xf32>
    %36 = tpu.reciprocal %35 {approx = true} : vector<8x1xf32> -> vector<8x1xf32>
    %37 = vector.broadcast %36 : vector<8x1xf32> to vector<8x8xf32>
    %38 = arith.mulf %33, %37 : vector<8x8xf32>
    %39 = arith.truncf %38 : vector<8x8xf32> to vector<8x8xbf16>
    %cst_11 = arith.constant dense<0.000000e+00> : vector<8x8xf32>
    %40 = tpu.matmul %39, %27, %cst_11 {dimension_numbers = #tpu.dot_dimension_numbers<[1], [0], [0], [1], [0, 0, 1, 1], [], []>} : vector<8x8xbf16>, vector<8x8xbf16>, vector<8x8xf32> -> vector<8x8xf32>
    %41 = arith.truncf %40 : vector<8x8xf32> to vector<8x8xbf16>
    %c0_12 = arith.constant 0 : index
    %c0_13 = arith.constant 0 : index
    %c0_14 = arith.constant 0 : index
    %42 = vector.load %arg3[%c0_12, %c0_13, %c0_14] : memref<4x8x32xbf16, #tpu.memory_space<vmem>>, vector<1x8x32xbf16>
    %43 = vector.shape_cast %42 : vector<1x8x32xbf16> to vector<8x32xbf16>
    %cst_15 = arith.constant dense<0.000000e+00> : vector<8x32xf32>
    %44 = tpu.matmul %41, %43, %cst_15 {dimension_numbers = #tpu.dot_dimension_numbers<[1], [0], [0], [1], [0, 0, 1, 1], [], []>} : vector<8x8xbf16>, vector<8x32xbf16>, vector<8x32xf32> -> vector<8x32xf32>
    %45 = arith.addf %21, %44 : vector<8x32xf32>
    %46 = vector.extract_strided_slice %20 {offsets = [0, 8], sizes = [8, 8], strides = [1, 1]} : vector<8x32xf32> to vector<8x8xf32>
    %47 = arith.truncf %46 : vector<8x8xf32> to vector<8x8xbf16>
    %48 = vector.extract_strided_slice %13 {offsets = [0, 8], sizes = [8, 8], strides = [1, 1]} : vector<8x32xf32> to vector<8x8xf32>
    %49 = arith.truncf %48 : vector<8x8xf32> to vector<8x8xbf16>
    %50 = vector.extract_strided_slice %17 {offsets = [0, 8], sizes = [8, 8], strides = [1, 1]} : vector<8x32xf32> to vector<8x8xf32>
    %51 = arith.truncf %50 : vector<8x8xf32> to vector<8x8xbf16>
    %cst_16 = arith.constant dense<0.000000e+00> : vector<8x8xf32>
    %52 = tpu.matmul %47, %49, %cst_16 {dimension_numbers = #tpu.dot_dimension_numbers<[1], [1], [0], [0], [0, 0, 1, 0], [], []>} : vector<8x8xbf16>, vector<8x8xbf16>, vector<8x8xf32> -> vector<8x8xf32>
    %cst_17 = arith.constant dense<0xFF800000> : vector<8xf32>
    %53 = vector.multi_reduction <maximumf>, %52, %cst_17 [1] : vector<8x8xf32> to vector<8xf32>
    %54 = vector.shape_cast %53 : vector<8xf32> to vector<8x1xf32>
    %55 = vector.broadcast %54 : vector<8x1xf32> to vector<8x8xf32>
    %56 = arith.subf %52, %55 : vector<8x8xf32>
    %57 = math.exp %56 : vector<8x8xf32>
    %cst_18 = arith.constant dense<0.000000e+00> : vector<8xf32>
    %58 = vector.multi_reduction <add>, %57, %cst_18 [1] : vector<8x8xf32> to vector<8xf32>
    %59 = vector.shape_cast %58 : vector<8xf32> to vector<8x1xf32>
    %60 = tpu.reciprocal %59 {approx = true} : vector<8x1xf32> -> vector<8x1xf32>
    %61 = vector.broadcast %60 : vector<8x1xf32> to vector<8x8xf32>
    %62 = arith.mulf %57, %61 : vector<8x8xf32>
    %63 = arith.truncf %62 : vector<8x8xf32> to vector<8x8xbf16>
    %cst_19 = arith.constant dense<0.000000e+00> : vector<8x8xf32>
    %64 = tpu.matmul %63, %51, %cst_19 {dimension_numbers = #tpu.dot_dimension_numbers<[1], [0], [0], [1], [0, 0, 1, 1], [], []>} : vector<8x8xbf16>, vector<8x8xbf16>, vector<8x8xf32> -> vector<8x8xf32>
    %65 = arith.truncf %64 : vector<8x8xf32> to vector<8x8xbf16>
    %c1 = arith.constant 1 : index
    %c0_20 = arith.constant 0 : index
    %c0_21 = arith.constant 0 : index
    %66 = vector.load %arg3[%c1, %c0_20, %c0_21] : memref<4x8x32xbf16, #tpu.memory_space<vmem>>, vector<1x8x32xbf16>
    %67 = vector.shape_cast %66 : vector<1x8x32xbf16> to vector<8x32xbf16>
    %cst_22 = arith.constant dense<0.000000e+00> : vector<8x32xf32>
    %68 = tpu.matmul %65, %67, %cst_22 {dimension_numbers = #tpu.dot_dimension_numbers<[1], [0], [0], [1], [0, 0, 1, 1], [], []>} : vector<8x8xbf16>, vector<8x32xbf16>, vector<8x32xf32> -> vector<8x32xf32>
    %69 = arith.addf %45, %68 : vector<8x32xf32>
    %70 = vector.extract_strided_slice %20 {offsets = [0, 16], sizes = [8, 8], strides = [1, 1]} : vector<8x32xf32> to vector<8x8xf32>
    %71 = arith.truncf %70 : vector<8x8xf32> to vector<8x8xbf16>
    %72 = vector.extract_strided_slice %13 {offsets = [0, 16], sizes = [8, 8], strides = [1, 1]} : vector<8x32xf32> to vector<8x8xf32>
    %73 = arith.truncf %72 : vector<8x8xf32> to vector<8x8xbf16>
    %74 = vector.extract_strided_slice %17 {offsets = [0, 16], sizes = [8, 8], strides = [1, 1]} : vector<8x32xf32> to vector<8x8xf32>
    %75 = arith.truncf %74 : vector<8x8xf32> to vector<8x8xbf16>
    %cst_23 = arith.constant dense<0.000000e+00> : vector<8x8xf32>
    %76 = tpu.matmul %71, %73, %cst_23 {dimension_numbers = #tpu.dot_dimension_numbers<[1], [1], [0], [0], [0, 0, 1, 0], [], []>} : vector<8x8xbf16>, vector<8x8xbf16>, vector<8x8xf32> -> vector<8x8xf32>
    %cst_24 = arith.constant dense<0xFF800000> : vector<8xf32>
    %77 = vector.multi_reduction <maximumf>, %76, %cst_24 [1] : vector<8x8xf32> to vector<8xf32>
    %78 = vector.shape_cast %77 : vector<8xf32> to vector<8x1xf32>
    %79 = vector.broadcast %78 : vector<8x1xf32> to vector<8x8xf32>
    %80 = arith.subf %76, %79 : vector<8x8xf32>
    %81 = math.exp %80 : vector<8x8xf32>
    %cst_25 = arith.constant dense<0.000000e+00> : vector<8xf32>
    %82 = vector.multi_reduction <add>, %81, %cst_25 [1] : vector<8x8xf32> to vector<8xf32>
    %83 = vector.shape_cast %82 : vector<8xf32> to vector<8x1xf32>
    %84 = tpu.reciprocal %83 {approx = true} : vector<8x1xf32> -> vector<8x1xf32>
    %85 = vector.broadcast %84 : vector<8x1xf32> to vector<8x8xf32>
    %86 = arith.mulf %81, %85 : vector<8x8xf32>
    %87 = arith.truncf %86 : vector<8x8xf32> to vector<8x8xbf16>
    %cst_26 = arith.constant dense<0.000000e+00> : vector<8x8xf32>
    %88 = tpu.matmul %87, %75, %cst_26 {dimension_numbers = #tpu.dot_dimension_numbers<[1], [0], [0], [1], [0, 0, 1, 1], [], []>} : vector<8x8xbf16>, vector<8x8xbf16>, vector<8x8xf32> -> vector<8x8xf32>
    %89 = arith.truncf %88 : vector<8x8xf32> to vector<8x8xbf16>
    %c2 = arith.constant 2 : index
    %c0_27 = arith.constant 0 : index
    %c0_28 = arith.constant 0 : index
    %90 = vector.load %arg3[%c2, %c0_27, %c0_28] : memref<4x8x32xbf16, #tpu.memory_space<vmem>>, vector<1x8x32xbf16>
    %91 = vector.shape_cast %90 : vector<1x8x32xbf16> to vector<8x32xbf16>
    %cst_29 = arith.constant dense<0.000000e+00> : vector<8x32xf32>
    %92 = tpu.matmul %89, %91, %cst_29 {dimension_numbers = #tpu.dot_dimension_numbers<[1], [0], [0], [1], [0, 0, 1, 1], [], []>} : vector<8x8xbf16>, vector<8x32xbf16>, vector<8x32xf32> -> vector<8x32xf32>
    %93 = arith.addf %69, %92 : vector<8x32xf32>
    %94 = vector.extract_strided_slice %20 {offsets = [0, 24], sizes = [8, 8], strides = [1, 1]} : vector<8x32xf32> to vector<8x8xf32>
    %95 = arith.truncf %94 : vector<8x8xf32> to vector<8x8xbf16>
    %96 = vector.extract_strided_slice %13 {offsets = [0, 24], sizes = [8, 8], strides = [1, 1]} : vector<8x32xf32> to vector<8x8xf32>
    %97 = arith.truncf %96 : vector<8x8xf32> to vector<8x8xbf16>
    %98 = vector.extract_strided_slice %17 {offsets = [0, 24], sizes = [8, 8], strides = [1, 1]} : vector<8x32xf32> to vector<8x8xf32>
    %99 = arith.truncf %98 : vector<8x8xf32> to vector<8x8xbf16>
    %cst_30 = arith.constant dense<0.000000e+00> : vector<8x8xf32>
    %100 = tpu.matmul %95, %97, %cst_30 {dimension_numbers = #tpu.dot_dimension_numbers<[1], [1], [0], [0], [0, 0, 1, 0], [], []>} : vector<8x8xbf16>, vector<8x8xbf16>, vector<8x8xf32> -> vector<8x8xf32>
    %cst_31 = arith.constant dense<0xFF800000> : vector<8xf32>
    %101 = vector.multi_reduction <maximumf>, %100, %cst_31 [1] : vector<8x8xf32> to vector<8xf32>
    %102 = vector.shape_cast %101 : vector<8xf32> to vector<8x1xf32>
    %103 = vector.broadcast %102 : vector<8x1xf32> to vector<8x8xf32>
    %104 = arith.subf %100, %103 : vector<8x8xf32>
    %105 = math.exp %104 : vector<8x8xf32>
    %cst_32 = arith.constant dense<0.000000e+00> : vector<8xf32>
    %106 = vector.multi_reduction <add>, %105, %cst_32 [1] : vector<8x8xf32> to vector<8xf32>
    %107 = vector.shape_cast %106 : vector<8xf32> to vector<8x1xf32>
    %108 = tpu.reciprocal %107 {approx = true} : vector<8x1xf32> -> vector<8x1xf32>
    %109 = vector.broadcast %108 : vector<8x1xf32> to vector<8x8xf32>
    %110 = arith.mulf %105, %109 : vector<8x8xf32>
    %111 = arith.truncf %110 : vector<8x8xf32> to vector<8x8xbf16>
    %cst_33 = arith.constant dense<0.000000e+00> : vector<8x8xf32>
    %112 = tpu.matmul %111, %99, %cst_33 {dimension_numbers = #tpu.dot_dimension_numbers<[1], [0], [0], [1], [0, 0, 1, 1], [], []>} : vector<8x8xbf16>, vector<8x8xbf16>, vector<8x8xf32> -> vector<8x8xf32>
    %113 = arith.truncf %112 : vector<8x8xf32> to vector<8x8xbf16>
    %c3 = arith.constant 3 : index
    %c0_34 = arith.constant 0 : index
    %c0_35 = arith.constant 0 : index
    %114 = vector.load %arg3[%c3, %c0_34, %c0_35] : memref<4x8x32xbf16, #tpu.memory_space<vmem>>, vector<1x8x32xbf16>
    %115 = vector.shape_cast %114 : vector<1x8x32xbf16> to vector<8x32xbf16>
    %cst_36 = arith.constant dense<0.000000e+00> : vector<8x32xf32>
    %116 = tpu.matmul %113, %115, %cst_36 {dimension_numbers = #tpu.dot_dimension_numbers<[1], [0], [0], [1], [0, 0, 1, 1], [], []>} : vector<8x8xbf16>, vector<8x32xbf16>, vector<8x32xf32> -> vector<8x32xf32>
    %117 = arith.addf %93, %116 : vector<8x32xf32>
    %118 = vector.broadcast %18 : vector<1x32xf32> to vector<8x32xf32>
    %119 = arith.addf %117, %118 : vector<8x32xf32>
    %120 = arith.addf %119, %1 : vector<8x32xf32>
    %121 = vector.extract_strided_slice %2 {offsets = [8, 0], sizes = [1, 32], strides = [1, 1]} : vector<16x32xf32> to vector<1x32xf32>
    %122 = vector.extract_strided_slice %2 {offsets = [9, 0], sizes = [1, 32], strides = [1, 1]} : vector<16x32xf32> to vector<1x32xf32>
    %cst_37 = arith.constant dense<0.000000e+00> : vector<8xf32>
    %123 = vector.multi_reduction <add>, %120, %cst_37 [1] : vector<8x32xf32> to vector<8xf32>
    %124 = vector.shape_cast %123 : vector<8xf32> to vector<8x1xf32>
    %cst_38 = arith.constant 3.200000e+01 : f32
    %125 = vector.broadcast %cst_38 : f32 to vector<8x1xf32>
    %126 = arith.divf %124, %125 : vector<8x1xf32>
    %127 = vector.broadcast %126 : vector<8x1xf32> to vector<8x32xf32>
    %128 = arith.subf %120, %127 : vector<8x32xf32>
    %129 = arith.mulf %128, %128 : vector<8x32xf32>
    %cst_39 = arith.constant dense<0.000000e+00> : vector<8xf32>
    %130 = vector.multi_reduction <add>, %129, %cst_39 [1] : vector<8x32xf32> to vector<8xf32>
    %131 = vector.shape_cast %130 : vector<8xf32> to vector<8x1xf32>
    %cst_40 = arith.constant 3.200000e+01 : f32
    %132 = vector.broadcast %cst_40 : f32 to vector<8x1xf32>
    %133 = arith.divf %131, %132 : vector<8x1xf32>
    %134 = vector.broadcast %126 : vector<8x1xf32> to vector<8x32xf32>
    %135 = arith.subf %120, %134 : vector<8x32xf32>
    %cst_41 = arith.constant 9.99999974E-6 : f32
    %136 = vector.broadcast %cst_41 : f32 to vector<8x1xf32>
    %137 = arith.addf %133, %136 : vector<8x1xf32>
    %138 = math.rsqrt %137 : vector<8x1xf32>
    %139 = vector.broadcast %138 : vector<8x1xf32> to vector<8x32xf32>
    %140 = arith.mulf %135, %139 : vector<8x32xf32>
    %141 = vector.broadcast %121 : vector<1x32xf32> to vector<8x32xf32>
    %142 = arith.mulf %140, %141 : vector<8x32xf32>
    %143 = vector.broadcast %122 : vector<1x32xf32> to vector<8x32xf32>
    %144 = arith.addf %142, %143 : vector<8x32xf32>
    %c0_42 = arith.constant 0 : index
    %c0_43 = arith.constant 0 : index
    %145 = vector.load %arg4[%c0_42, %c0_43] : memref<32x96xbf16, #tpu.memory_space<vmem>>, vector<32x96xbf16>
    %146 = arith.truncf %144 : vector<8x32xf32> to vector<8x32xbf16>
    %147 = vector.extract_strided_slice %145 {offsets = [0, 0], sizes = [32, 32], strides = [1, 1]} : vector<32x96xbf16> to vector<32x32xbf16>
    %cst_44 = arith.constant dense<0.000000e+00> : vector<8x32xf32>
    %148 = tpu.matmul %146, %147, %cst_44 {dimension_numbers = #tpu.dot_dimension_numbers<[1], [0], [0], [1], [0, 0, 1, 1], [], []>} : vector<8x32xbf16>, vector<32x32xbf16>, vector<8x32xf32> -> vector<8x32xf32>
    %149 = vector.extract_strided_slice %2 {offsets = [4, 0], sizes = [1, 32], strides = [1, 1]} : vector<16x32xf32> to vector<1x32xf32>
    %150 = vector.broadcast %149 : vector<1x32xf32> to vector<8x32xf32>
    %151 = arith.addf %148, %150 : vector<8x32xf32>
    %152 = vector.extract_strided_slice %145 {offsets = [0, 32], sizes = [32, 64], strides = [1, 1]} : vector<32x96xbf16> to vector<32x64xbf16>
    %cst_45 = arith.constant dense<0.000000e+00> : vector<8x64xf32>
    %153 = tpu.matmul %3, %152, %cst_45 {dimension_numbers = #tpu.dot_dimension_numbers<[1], [0], [0], [1], [0, 0, 1, 1], [], []>} : vector<8x32xbf16>, vector<32x64xbf16>, vector<8x64xf32> -> vector<8x64xf32>
    %154 = vector.extract_strided_slice %153 {offsets = [0, 0], sizes = [8, 32], strides = [1, 1]} : vector<8x64xf32> to vector<8x32xf32>
    %155 = vector.extract_strided_slice %2 {offsets = [5, 0], sizes = [1, 32], strides = [1, 1]} : vector<16x32xf32> to vector<1x32xf32>
    %156 = vector.broadcast %155 : vector<1x32xf32> to vector<8x32xf32>
    %157 = arith.addf %154, %156 : vector<8x32xf32>
    %158 = vector.extract_strided_slice %153 {offsets = [0, 32], sizes = [8, 32], strides = [1, 1]} : vector<8x64xf32> to vector<8x32xf32>
    %159 = vector.extract_strided_slice %2 {offsets = [6, 0], sizes = [1, 32], strides = [1, 1]} : vector<16x32xf32> to vector<1x32xf32>
    %160 = vector.broadcast %159 : vector<1x32xf32> to vector<8x32xf32>
    %161 = arith.addf %158, %160 : vector<8x32xf32>
    %162 = vector.extract_strided_slice %2 {offsets = [7, 0], sizes = [1, 32], strides = [1, 1]} : vector<16x32xf32> to vector<1x32xf32>
    %cst_46 = arith.constant 0.353553385 : f32
    %163 = vector.broadcast %cst_46 : f32 to vector<8x32xf32>
    %164 = arith.mulf %151, %163 : vector<8x32xf32>
    %cst_47 = arith.constant 0.000000e+00 : f32
    %165 = vector.broadcast %cst_47 : f32 to vector<8x32xf32>
    %166 = vector.extract_strided_slice %164 {offsets = [0, 0], sizes = [8, 8], strides = [1, 1]} : vector<8x32xf32> to vector<8x8xf32>
    %167 = arith.truncf %166 : vector<8x8xf32> to vector<8x8xbf16>
    %168 = vector.extract_strided_slice %157 {offsets = [0, 0], sizes = [8, 8], strides = [1, 1]} : vector<8x32xf32> to vector<8x8xf32>
    %169 = arith.truncf %168 : vector<8x8xf32> to vector<8x8xbf16>
    %170 = vector.extract_strided_slice %161 {offsets = [0, 0], sizes = [8, 8], strides = [1, 1]} : vector<8x32xf32> to vector<8x8xf32>
    %171 = arith.truncf %170 : vector<8x8xf32> to vector<8x8xbf16>
    %cst_48 = arith.constant dense<0.000000e+00> : vector<8x8xf32>
    %172 = tpu.matmul %167, %169, %cst_48 {dimension_numbers = #tpu.dot_dimension_numbers<[1], [1], [0], [0], [0, 0, 1, 0], [], []>} : vector<8x8xbf16>, vector<8x8xbf16>, vector<8x8xf32> -> vector<8x8xf32>
    %cst_49 = arith.constant dense<0xFF800000> : vector<8xf32>
    %173 = vector.multi_reduction <maximumf>, %172, %cst_49 [1] : vector<8x8xf32> to vector<8xf32>
    %174 = vector.shape_cast %173 : vector<8xf32> to vector<8x1xf32>
    %175 = vector.broadcast %174 : vector<8x1xf32> to vector<8x8xf32>
    %176 = arith.subf %172, %175 : vector<8x8xf32>
    %177 = math.exp %176 : vector<8x8xf32>
    %cst_50 = arith.constant dense<0.000000e+00> : vector<8xf32>
    %178 = vector.multi_reduction <add>, %177, %cst_50 [1] : vector<8x8xf32> to vector<8xf32>
    %179 = vector.shape_cast %178 : vector<8xf32> to vector<8x1xf32>
    %180 = tpu.reciprocal %179 {approx = true} : vector<8x1xf32> -> vector<8x1xf32>
    %181 = vector.broadcast %180 : vector<8x1xf32> to vector<8x8xf32>
    %182 = arith.mulf %177, %181 : vector<8x8xf32>
    %183 = arith.truncf %182 : vector<8x8xf32> to vector<8x8xbf16>
    %cst_51 = arith.constant dense<0.000000e+00> : vector<8x8xf32>
    %184 = tpu.matmul %183, %171, %cst_51 {dimension_numbers = #tpu.dot_dimension_numbers<[1], [0], [0], [1], [0, 0, 1, 1], [], []>} : vector<8x8xbf16>, vector<8x8xbf16>, vector<8x8xf32> -> vector<8x8xf32>
    %185 = arith.truncf %184 : vector<8x8xf32> to vector<8x8xbf16>
    %c0_52 = arith.constant 0 : index
    %c0_53 = arith.constant 0 : index
    %c0_54 = arith.constant 0 : index
    %186 = vector.load %arg5[%c0_52, %c0_53, %c0_54] : memref<4x8x32xbf16, #tpu.memory_space<vmem>>, vector<1x8x32xbf16>
    %187 = vector.shape_cast %186 : vector<1x8x32xbf16> to vector<8x32xbf16>
    %cst_55 = arith.constant dense<0.000000e+00> : vector<8x32xf32>
    %188 = tpu.matmul %185, %187, %cst_55 {dimension_numbers = #tpu.dot_dimension_numbers<[1], [0], [0], [1], [0, 0, 1, 1], [], []>} : vector<8x8xbf16>, vector<8x32xbf16>, vector<8x32xf32> -> vector<8x32xf32>
    %189 = arith.addf %165, %188 : vector<8x32xf32>
    %190 = vector.extract_strided_slice %164 {offsets = [0, 8], sizes = [8, 8], strides = [1, 1]} : vector<8x32xf32> to vector<8x8xf32>
    %191 = arith.truncf %190 : vector<8x8xf32> to vector<8x8xbf16>
    %192 = vector.extract_strided_slice %157 {offsets = [0, 8], sizes = [8, 8], strides = [1, 1]} : vector<8x32xf32> to vector<8x8xf32>
    %193 = arith.truncf %192 : vector<8x8xf32> to vector<8x8xbf16>
    %194 = vector.extract_strided_slice %161 {offsets = [0, 8], sizes = [8, 8], strides = [1, 1]} : vector<8x32xf32> to vector<8x8xf32>
    %195 = arith.truncf %194 : vector<8x8xf32> to vector<8x8xbf16>
    %cst_56 = arith.constant dense<0.000000e+00> : vector<8x8xf32>
    %196 = tpu.matmul %191, %193, %cst_56 {dimension_numbers = #tpu.dot_dimension_numbers<[1], [1], [0], [0], [0, 0, 1, 0], [], []>} : vector<8x8xbf16>, vector<8x8xbf16>, vector<8x8xf32> -> vector<8x8xf32>
    %cst_57 = arith.constant dense<0xFF800000> : vector<8xf32>
    %197 = vector.multi_reduction <maximumf>, %196, %cst_57 [1] : vector<8x8xf32> to vector<8xf32>
    %198 = vector.shape_cast %197 : vector<8xf32> to vector<8x1xf32>
    %199 = vector.broadcast %198 : vector<8x1xf32> to vector<8x8xf32>
    %200 = arith.subf %196, %199 : vector<8x8xf32>
    %201 = math.exp %200 : vector<8x8xf32>
    %cst_58 = arith.constant dense<0.000000e+00> : vector<8xf32>
    %202 = vector.multi_reduction <add>, %201, %cst_58 [1] : vector<8x8xf32> to vector<8xf32>
    %203 = vector.shape_cast %202 : vector<8xf32> to vector<8x1xf32>
    %204 = tpu.reciprocal %203 {approx = true} : vector<8x1xf32> -> vector<8x1xf32>
    %205 = vector.broadcast %204 : vector<8x1xf32> to vector<8x8xf32>
    %206 = arith.mulf %201, %205 : vector<8x8xf32>
    %207 = arith.truncf %206 : vector<8x8xf32> to vector<8x8xbf16>
    %cst_59 = arith.constant dense<0.000000e+00> : vector<8x8xf32>
    %208 = tpu.matmul %207, %195, %cst_59 {dimension_numbers = #tpu.dot_dimension_numbers<[1], [0], [0], [1], [0, 0, 1, 1], [], []>} : vector<8x8xbf16>, vector<8x8xbf16>, vector<8x8xf32> -> vector<8x8xf32>
    %209 = arith.truncf %208 : vector<8x8xf32> to vector<8x8xbf16>
    %c1_60 = arith.constant 1 : index
    %c0_61 = arith.constant 0 : index
    %c0_62 = arith.constant 0 : index
    %210 = vector.load %arg5[%c1_60, %c0_61, %c0_62] : memref<4x8x32xbf16, #tpu.memory_space<vmem>>, vector<1x8x32xbf16>
    %211 = vector.shape_cast %210 : vector<1x8x32xbf16> to vector<8x32xbf16>
    %cst_63 = arith.constant dense<0.000000e+00> : vector<8x32xf32>
    %212 = tpu.matmul %209, %211, %cst_63 {dimension_numbers = #tpu.dot_dimension_numbers<[1], [0], [0], [1], [0, 0, 1, 1], [], []>} : vector<8x8xbf16>, vector<8x32xbf16>, vector<8x32xf32> -> vector<8x32xf32>
    %213 = arith.addf %189, %212 : vector<8x32xf32>
    %214 = vector.extract_strided_slice %164 {offsets = [0, 16], sizes = [8, 8], strides = [1, 1]} : vector<8x32xf32> to vector<8x8xf32>
    %215 = arith.truncf %214 : vector<8x8xf32> to vector<8x8xbf16>
    %216 = vector.extract_strided_slice %157 {offsets = [0, 16], sizes = [8, 8], strides = [1, 1]} : vector<8x32xf32> to vector<8x8xf32>
    %217 = arith.truncf %216 : vector<8x8xf32> to vector<8x8xbf16>
    %218 = vector.extract_strided_slice %161 {offsets = [0, 16], sizes = [8, 8], strides = [1, 1]} : vector<8x32xf32> to vector<8x8xf32>
    %219 = arith.truncf %218 : vector<8x8xf32> to vector<8x8xbf16>
    %cst_64 = arith.constant dense<0.000000e+00> : vector<8x8xf32>
    %220 = tpu.matmul %215, %217, %cst_64 {dimension_numbers = #tpu.dot_dimension_numbers<[1], [1], [0], [0], [0, 0, 1, 0], [], []>} : vector<8x8xbf16>, vector<8x8xbf16>, vector<8x8xf32> -> vector<8x8xf32>
    %cst_65 = arith.constant dense<0xFF800000> : vector<8xf32>
    %221 = vector.multi_reduction <maximumf>, %220, %cst_65 [1] : vector<8x8xf32> to vector<8xf32>
    %222 = vector.shape_cast %221 : vector<8xf32> to vector<8x1xf32>
    %223 = vector.broadcast %222 : vector<8x1xf32> to vector<8x8xf32>
    %224 = arith.subf %220, %223 : vector<8x8xf32>
    %225 = math.exp %224 : vector<8x8xf32>
    %cst_66 = arith.constant dense<0.000000e+00> : vector<8xf32>
    %226 = vector.multi_reduction <add>, %225, %cst_66 [1] : vector<8x8xf32> to vector<8xf32>
    %227 = vector.shape_cast %226 : vector<8xf32> to vector<8x1xf32>
    %228 = tpu.reciprocal %227 {approx = true} : vector<8x1xf32> -> vector<8x1xf32>
    %229 = vector.broadcast %228 : vector<8x1xf32> to vector<8x8xf32>
    %230 = arith.mulf %225, %229 : vector<8x8xf32>
    %231 = arith.truncf %230 : vector<8x8xf32> to vector<8x8xbf16>
    %cst_67 = arith.constant dense<0.000000e+00> : vector<8x8xf32>
    %232 = tpu.matmul %231, %219, %cst_67 {dimension_numbers = #tpu.dot_dimension_numbers<[1], [0], [0], [1], [0, 0, 1, 1], [], []>} : vector<8x8xbf16>, vector<8x8xbf16>, vector<8x8xf32> -> vector<8x8xf32>
    %233 = arith.truncf %232 : vector<8x8xf32> to vector<8x8xbf16>
    %c2_68 = arith.constant 2 : index
    %c0_69 = arith.constant 0 : index
    %c0_70 = arith.constant 0 : index
    %234 = vector.load %arg5[%c2_68, %c0_69, %c0_70] : memref<4x8x32xbf16, #tpu.memory_space<vmem>>, vector<1x8x32xbf16>
    %235 = vector.shape_cast %234 : vector<1x8x32xbf16> to vector<8x32xbf16>
    %cst_71 = arith.constant dense<0.000000e+00> : vector<8x32xf32>
    %236 = tpu.matmul %233, %235, %cst_71 {dimension_numbers = #tpu.dot_dimension_numbers<[1], [0], [0], [1], [0, 0, 1, 1], [], []>} : vector<8x8xbf16>, vector<8x32xbf16>, vector<8x32xf32> -> vector<8x32xf32>
    %237 = arith.addf %213, %236 : vector<8x32xf32>
    %238 = vector.extract_strided_slice %164 {offsets = [0, 24], sizes = [8, 8], strides = [1, 1]} : vector<8x32xf32> to vector<8x8xf32>
    %239 = arith.truncf %238 : vector<8x8xf32> to vector<8x8xbf16>
    %240 = vector.extract_strided_slice %157 {offsets = [0, 24], sizes = [8, 8], strides = [1, 1]} : vector<8x32xf32> to vector<8x8xf32>
    %241 = arith.truncf %240 : vector<8x8xf32> to vector<8x8xbf16>
    %242 = vector.extract_strided_slice %161 {offsets = [0, 24], sizes = [8, 8], strides = [1, 1]} : vector<8x32xf32> to vector<8x8xf32>
    %243 = arith.truncf %242 : vector<8x8xf32> to vector<8x8xbf16>
    %cst_72 = arith.constant dense<0.000000e+00> : vector<8x8xf32>
    %244 = tpu.matmul %239, %241, %cst_72 {dimension_numbers = #tpu.dot_dimension_numbers<[1], [1], [0], [0], [0, 0, 1, 0], [], []>} : vector<8x8xbf16>, vector<8x8xbf16>, vector<8x8xf32> -> vector<8x8xf32>
    %cst_73 = arith.constant dense<0xFF800000> : vector<8xf32>
    %245 = vector.multi_reduction <maximumf>, %244, %cst_73 [1] : vector<8x8xf32> to vector<8xf32>
    %246 = vector.shape_cast %245 : vector<8xf32> to vector<8x1xf32>
    %247 = vector.broadcast %246 : vector<8x1xf32> to vector<8x8xf32>
    %248 = arith.subf %244, %247 : vector<8x8xf32>
    %249 = math.exp %248 : vector<8x8xf32>
    %cst_74 = arith.constant dense<0.000000e+00> : vector<8xf32>
    %250 = vector.multi_reduction <add>, %249, %cst_74 [1] : vector<8x8xf32> to vector<8xf32>
    %251 = vector.shape_cast %250 : vector<8xf32> to vector<8x1xf32>
    %252 = tpu.reciprocal %251 {approx = true} : vector<8x1xf32> -> vector<8x1xf32>
    %253 = vector.broadcast %252 : vector<8x1xf32> to vector<8x8xf32>
    %254 = arith.mulf %249, %253 : vector<8x8xf32>
    %255 = arith.truncf %254 : vector<8x8xf32> to vector<8x8xbf16>
    %cst_75 = arith.constant dense<0.000000e+00> : vector<8x8xf32>
    %256 = tpu.matmul %255, %243, %cst_75 {dimension_numbers = #tpu.dot_dimension_numbers<[1], [0], [0], [1], [0, 0, 1, 1], [], []>} : vector<8x8xbf16>, vector<8x8xbf16>, vector<8x8xf32> -> vector<8x8xf32>
    %257 = arith.truncf %256 : vector<8x8xf32> to vector<8x8xbf16>
    %c3_76 = arith.constant 3 : index
    %c0_77 = arith.constant 0 : index
    %c0_78 = arith.constant 0 : index
    %258 = vector.load %arg5[%c3_76, %c0_77, %c0_78] : memref<4x8x32xbf16, #tpu.memory_space<vmem>>, vector<1x8x32xbf16>
    %259 = vector.shape_cast %258 : vector<1x8x32xbf16> to vector<8x32xbf16>
    %cst_79 = arith.constant dense<0.000000e+00> : vector<8x32xf32>
    %260 = tpu.matmul %257, %259, %cst_79 {dimension_numbers = #tpu.dot_dimension_numbers<[1], [0], [0], [1], [0, 0, 1, 1], [], []>} : vector<8x8xbf16>, vector<8x32xbf16>, vector<8x32xf32> -> vector<8x32xf32>
    %261 = arith.addf %237, %260 : vector<8x32xf32>
    %262 = vector.broadcast %162 : vector<1x32xf32> to vector<8x32xf32>
    %263 = arith.addf %261, %262 : vector<8x32xf32>
    %264 = arith.addf %263, %144 : vector<8x32xf32>
    %265 = vector.extract_strided_slice %2 {offsets = [10, 0], sizes = [1, 32], strides = [1, 1]} : vector<16x32xf32> to vector<1x32xf32>
    %266 = vector.extract_strided_slice %2 {offsets = [11, 0], sizes = [1, 32], strides = [1, 1]} : vector<16x32xf32> to vector<1x32xf32>
    %cst_80 = arith.constant dense<0.000000e+00> : vector<8xf32>
    %267 = vector.multi_reduction <add>, %264, %cst_80 [1] : vector<8x32xf32> to vector<8xf32>
    %268 = vector.shape_cast %267 : vector<8xf32> to vector<8x1xf32>
    %cst_81 = arith.constant 3.200000e+01 : f32
    %269 = vector.broadcast %cst_81 : f32 to vector<8x1xf32>
    %270 = arith.divf %268, %269 : vector<8x1xf32>
    %271 = vector.broadcast %270 : vector<8x1xf32> to vector<8x32xf32>
    %272 = arith.subf %264, %271 : vector<8x32xf32>
    %273 = arith.mulf %272, %272 : vector<8x32xf32>
    %cst_82 = arith.constant dense<0.000000e+00> : vector<8xf32>
    %274 = vector.multi_reduction <add>, %273, %cst_82 [1] : vector<8x32xf32> to vector<8xf32>
    %275 = vector.shape_cast %274 : vector<8xf32> to vector<8x1xf32>
    %cst_83 = arith.constant 3.200000e+01 : f32
    %276 = vector.broadcast %cst_83 : f32 to vector<8x1xf32>
    %277 = arith.divf %275, %276 : vector<8x1xf32>
    %278 = vector.broadcast %270 : vector<8x1xf32> to vector<8x32xf32>
    %279 = arith.subf %264, %278 : vector<8x32xf32>
    %cst_84 = arith.constant 9.99999974E-6 : f32
    %280 = vector.broadcast %cst_84 : f32 to vector<8x1xf32>
    %281 = arith.addf %277, %280 : vector<8x1xf32>
    %282 = math.rsqrt %281 : vector<8x1xf32>
    %283 = vector.broadcast %282 : vector<8x1xf32> to vector<8x32xf32>
    %284 = arith.mulf %279, %283 : vector<8x32xf32>
    %285 = vector.broadcast %265 : vector<1x32xf32> to vector<8x32xf32>
    %286 = arith.mulf %284, %285 : vector<8x32xf32>
    %287 = vector.broadcast %266 : vector<1x32xf32> to vector<8x32xf32>
    %288 = arith.addf %286, %287 : vector<8x32xf32>
    %289 = arith.truncf %288 : vector<8x32xf32> to vector<8x32xbf16>
    %c0_85 = arith.constant 0 : index
    %c0_86 = arith.constant 0 : index
    %290 = vector.load %arg6[%c0_85, %c0_86] : memref<32x64xbf16, #tpu.memory_space<vmem>>, vector<32x64xbf16>
    %cst_87 = arith.constant dense<0.000000e+00> : vector<8x64xf32>
    %291 = tpu.matmul %289, %290, %cst_87 {dimension_numbers = #tpu.dot_dimension_numbers<[1], [0], [0], [1], [0, 0, 1, 1], [], []>} : vector<8x32xbf16>, vector<32x64xbf16>, vector<8x64xf32> -> vector<8x64xf32>
    %c0_88 = arith.constant 0 : index
    %c0_89 = arith.constant 0 : index
    %292 = vector.load %arg9[%c0_88, %c0_89] : memref<1x64xf32, #tpu.memory_space<vmem>>, vector<1x64xf32>
    %293 = vector.broadcast %292 : vector<1x64xf32> to vector<8x64xf32>
    %294 = arith.addf %291, %293 : vector<8x64xf32>
    %cst_90 = arith.constant 0.000000e+00 : f32
    %295 = vector.broadcast %cst_90 : f32 to vector<8x64xf32>
    %296 = arith.maximumf %294, %295 : vector<8x64xf32>
    %297 = arith.truncf %296 : vector<8x64xf32> to vector<8x64xbf16>
    %c0_91 = arith.constant 0 : index
    %c0_92 = arith.constant 0 : index
    %298 = vector.load %arg7[%c0_91, %c0_92] : memref<64x32xbf16, #tpu.memory_space<vmem>>, vector<64x32xbf16>
    %cst_93 = arith.constant dense<0.000000e+00> : vector<8x32xf32>
    %299 = tpu.matmul %297, %298, %cst_93 {dimension_numbers = #tpu.dot_dimension_numbers<[1], [0], [0], [1], [0, 0, 1, 1], [], []>} : vector<8x64xbf16>, vector<64x32xbf16>, vector<8x32xf32> -> vector<8x32xf32>
    %300 = vector.extract_strided_slice %2 {offsets = [14, 0], sizes = [1, 32], strides = [1, 1]} : vector<16x32xf32> to vector<1x32xf32>
    %301 = vector.broadcast %300 : vector<1x32xf32> to vector<8x32xf32>
    %302 = arith.addf %299, %301 : vector<8x32xf32>
    %303 = arith.addf %302, %288 : vector<8x32xf32>
    %304 = vector.extract_strided_slice %2 {offsets = [12, 0], sizes = [1, 32], strides = [1, 1]} : vector<16x32xf32> to vector<1x32xf32>
    %305 = vector.extract_strided_slice %2 {offsets = [13, 0], sizes = [1, 32], strides = [1, 1]} : vector<16x32xf32> to vector<1x32xf32>
    %cst_94 = arith.constant dense<0.000000e+00> : vector<8xf32>
    %306 = vector.multi_reduction <add>, %303, %cst_94 [1] : vector<8x32xf32> to vector<8xf32>
    %307 = vector.shape_cast %306 : vector<8xf32> to vector<8x1xf32>
    %cst_95 = arith.constant 3.200000e+01 : f32
    %308 = vector.broadcast %cst_95 : f32 to vector<8x1xf32>
    %309 = arith.divf %307, %308 : vector<8x1xf32>
    %310 = vector.broadcast %309 : vector<8x1xf32> to vector<8x32xf32>
    %311 = arith.subf %303, %310 : vector<8x32xf32>
    %312 = arith.mulf %311, %311 : vector<8x32xf32>
    %cst_96 = arith.constant dense<0.000000e+00> : vector<8xf32>
    %313 = vector.multi_reduction <add>, %312, %cst_96 [1] : vector<8x32xf32> to vector<8xf32>
    %314 = vector.shape_cast %313 : vector<8xf32> to vector<8x1xf32>
    %cst_97 = arith.constant 3.200000e+01 : f32
    %315 = vector.broadcast %cst_97 : f32 to vector<8x1xf32>
    %316 = arith.divf %314, %315 : vector<8x1xf32>
    %317 = vector.broadcast %309 : vector<8x1xf32> to vector<8x32xf32>
    %318 = arith.subf %303, %317 : vector<8x32xf32>
    %cst_98 = arith.constant 9.99999974E-6 : f32
    %319 = vector.broadcast %cst_98 : f32 to vector<8x1xf32>
    %320 = arith.addf %316, %319 : vector<8x1xf32>
    %321 = math.rsqrt %320 : vector<8x1xf32>
    %322 = vector.broadcast %321 : vector<8x1xf32> to vector<8x32xf32>
    %323 = arith.mulf %318, %322 : vector<8x32xf32>
    %324 = vector.broadcast %304 : vector<1x32xf32> to vector<8x32xf32>
    %325 = arith.mulf %323, %324 : vector<8x32xf32>
    %326 = vector.broadcast %305 : vector<1x32xf32> to vector<8x32xf32>
    %327 = arith.addf %325, %326 : vector<8x32xf32>
    %328 = vector.shape_cast %327 : vector<8x32xf32> to vector<1x8x32xf32>
    %c0_99 = arith.constant 0 : index
    %c0_100 = arith.constant 0 : index
    %c0_101 = arith.constant 0 : index
    %329 = vector.load %arg10[%c0_99, %c0_100, %c0_101] : memref<1x8x32xf32, #tpu.memory_space<vmem>>, vector<1x8x32xf32>
    tpu.vector_store %arg10[%c0_99, %c0_100, %c0_101], %328 {strides = array<i32>} : memref<1x8x32xf32, #tpu.memory_space<vmem>>, vector<1x8x32xf32>,
    return
  }
  func.func @transform_0(%arg0: i32) -> (i32, i32, i32) {
    %c0_i32 = arith.constant 0 : i32
    %c0_i32_0 = arith.constant 0 : i32
    %c0_i32_1 = arith.constant 0 : i32
    return %arg0, %c0_i32, %c0_i32_0 : i32, i32, i32
  }
  func.func @transform_1(%arg0: i32) -> (i32, i32) {
    %c0_i32 = arith.constant 0 : i32
    %c0_i32_0 = arith.constant 0 : i32
    %c0_i32_1 = arith.constant 0 : i32
    return %c0_i32, %c0_i32_0 : i32, i32
  }
  func.func @transform_2(%arg0: i32) -> (i32, i32, i32) {
    %c0_i32 = arith.constant 0 : i32
    %c0_i32_0 = arith.constant 0 : i32
    %c0_i32_1 = arith.constant 0 : i32
    %c0_i32_2 = arith.constant 0 : i32
    return %c0_i32, %c0_i32_0, %c0_i32_1 : i32, i32, i32
  }
  func.func @transform_3(%arg0: i32) -> (i32, i32) {
    %c0_i32 = arith.constant 0 : i32
    %c0_i32_0 = arith.constant 0 : i32
    %c0_i32_1 = arith.constant 0 : i32
    return %c0_i32, %c0_i32_0 : i32, i32
  }
  func.func @transform_4(%arg0: i32) -> (i32, i32, i32) {
    %c0_i32 = arith.constant 0 : i32
    %c0_i32_0 = arith.constant 0 : i32
    %c0_i32_1 = arith.constant 0 : i32
    %c0_i32_2 = arith.constant 0 : i32
    return %c0_i32, %c0_i32_0, %c0_i32_1 : i32, i32, i32
  }
  func.func @transform_5(%arg0: i32) -> (i32, i32) {
    %c0_i32 = arith.constant 0 : i32
    %c0_i32_0 = arith.constant 0 : i32
    %c0_i32_1 = arith.constant 0 : i32
    return %c0_i32, %c0_i32_0 : i32, i32
  }
  func.func @transform_6(%arg0: i32) -> (i32, i32) {
    %c0_i32 = arith.constant 0 : i32
    %c0_i32_0 = arith.constant 0 : i32
    %c0_i32_1 = arith.constant 0 : i32
    return %c0_i32, %c0_i32_0 : i32, i32
  }
  func.func @transform_7(%arg0: i32) -> (i32, i32) {
    %c0_i32 = arith.constant 0 : i32
    %c0_i32_0 = arith.constant 0 : i32
    %c0_i32_1 = arith.constant 0 : i32
    return %c0_i32, %c0_i32_0 : i32, i32
  }
  func.func @transform_8(%arg0: i32) -> (i32, i32) {
    %c0_i32 = arith.constant 0 : i32
    %c0_i32_0 = arith.constant 0 : i32
    %c0_i32_1 = arith.constant 0 : i32
    return %c0_i32, %c0_i32_0 : i32, i32
  }
  func.func @transform_9(%arg0: i32) -> (i32, i32, i32) {
    %c0_i32 = arith.constant 0 : i32
    %c0_i32_0 = arith.constant 0 : i32
    %c0_i32_1 = arith.constant 0 : i32
    return %arg0, %c0_i32, %c0_i32_0 : i32, i32, i32
  }
}

</mosaic_0001>

<llo_original>
// kernel: tpu_custom_call.1
$region0: #{tpu_custom_call.1}
  #allocation0 [shape = 'u32[]', space=smem, size = 0x4, offset = 0x4, fixed_abs, tag = 'smem constant byte address 0x4 - core index']
  #allocation1 [shape = 'u32[72,128]{1,0:T(1,128)}', space=vmem, size = 0x9000, scoped, tag = 'internal scratch']
  %s0 = inlined_call_operand.vmem [shape: f32[2,8,32], index: 0, kind: input, shape index: {}]
  %s1 = inlined_call_operand.vmem [shape: bf16[32,96], index: 1, kind: input, shape index: {}]
  %s2 = inlined_call_operand.vmem [shape: bf16[4,8,32], index: 2, kind: input, shape index: {}]
  %s3 = inlined_call_operand.hbm [shape: bf16[32,96], index: 3, kind: input, shape index: {}]
  %s4 = inlined_call_operand.hbm [shape: bf16[4,8,32], index: 4, kind: input, shape index: {}]
  %s5 = inlined_call_operand.hbm [shape: bf16[32,64], index: 5, kind: input, shape index: {}]
  %s6 = inlined_call_operand.vmem [shape: bf16[64,32], index: 6, kind: input, shape index: {}]
  %s7 = inlined_call_operand.hbm [shape: f32[16,32], index: 7, kind: input, shape index: {}]
  %s8 = inlined_call_operand.vmem [shape: f32[1,64], index: 8, kind: input, shape index: {}]
  %s9 = inlined_call_operand.hbm [shape: f32[2,8,32], index: 9, kind: output, shape index: {}]
  %s10 = sld [smem:[#allocation0]]
  $region85: #{tpu_custom_call.1} parent=0
    _
  %s12 = ssub.s32 1, %s10
  %s13 = scalar_select 0, %s12, %s10
  $region1: #{tpu_custom_call.1} parent=0
    #allocation2 [shape = 'u8[8192]{0}', space=vmem, size = 0x2000, scoped, tag = 'input window, operand 3, single buffered']
    #allocation3 [shape = 's32[2]{0}', space=sflag, size = 0x8, scoped, tag = 'scoped memory for tpu_custom_call.1']
    #allocation4 [shape = 's32[2]{0}', space=sflag, size = 0x8, scoped, tag = 'scoped memory for tpu_custom_call.1']
    #allocation5 [shape = 'u8[8192]{0}', space=vmem, size = 0x2000, scoped, tag = 'input window, operand 4, single buffered']
    #allocation6 [shape = 's32[1]{0}', space=sflag, size = 0x4, scoped, tag = 'scoped memory for tpu_custom_call.1']
    #allocation7 [shape = 'u8[8192]{0}', space=vmem, size = 0x2000, scoped, tag = 'input window, operand 5, single buffered']
    #allocation8 [shape = 'u8[8192]{0}', space=vmem, size = 0x2000, scoped, tag = 'input window, operand 7, single buffered']
    #allocation9 [shape = 's32[1]{0}', space=sflag, size = 0x4, scoped, tag = 'scoped memory for tpu_custom_call.1']
    #allocation10 [shape = 'u8[8192]{0}', space=vmem, size = 0x2000, scoped, tag = 'output window, operand 0']
    %14 = vsyncpa [#allocation3], 0
    %15 = vsyncpa [#allocation6], 0
    %16 = vsyncpa [#allocation9], 0
    %17 = vsyncpa [#allocation4], 0
    %s18 = scalar_lea.sflag [#allocation4], 1
    %19 = vsyncpa %s18, 0
    loop: start=0, step=1, limit=4
    $region2: #{tpu_custom_call.1} parent=1 // loop_pre_header
      _
    $region3: #{tpu_custom_call.1} parent=1 // loop_header
      %s21 = sphi 0, %s25
      %p22 = scmp.ge.s32.totalorder %s21, 4
      %s31 = sphi 0, %s33
      %s34 = sphi 0, %s31
      %s35 = sphi 0, %s34
      %s51 = sphi 0, %s35
      %s55 = sphi 0, %s55
      %s57 = sphi 0, %s55
      %s58 = sphi 0, %s57
      %s72 = sphi 0, %s58
      %s76 = sphi 0, %s76
      %s78 = sphi 0, %s76
      %s79 = sphi 0, %s78
      %s93 = sphi 0, %s79
      %s97 = sphi 0, %s97
      %s99 = sphi 0, %s97
      %s100 = sphi 0, %s99
      %s114 = sphi 0, %s100
      %s118 = sphi 0, %s118
      %s120 = sphi 0, %s118
      %s121 = sphi 0, %s120
      %s135 = sphi 0, %s121
      %s139 = sphi 0, %s139
      %s141 = sphi 0, %s139
      %s142 = sphi 0, %s141
      %s156 = sphi 0, %s142
      %s160 = sphi 0, %s160
      %s162 = sphi 0, %s160
      %s163 = sphi 0, %s162
      %s177 = sphi 0, %s163
      %s181 = sphi 0, %s181
      %s183 = sphi 0, %s181
      %s184 = sphi 0, %s183
      %s198 = sphi 0, %s184
      %s202 = sphi 0, %s202
      %s204 = sphi 0, %s202
      %s205 = sphi 0, %s204
      %s219 = sphi 0, %s205
      %s225 = sphi 0, %s227
      %s228 = sphi 0, %s225
      %s229 = sphi 0, %s228
      %s245 = sphi 0, %s229
    $region4: #{tpu_custom_call.1} parent=1 // loop_header_branch
      %24 = sbr.rel (%p22) target = $region8
    $region5: #{tpu_custom_call.1} parent=1 // loop_body
      %s26 = ssub.s32 %s21, 1
      %s27 = ssub.s32 %s21, 2
      %s28 = sadd.s32 %s21, 1
      %s29 = ssub.s32 %s21, %s28
      %p30 = scmp.eq.s32.totalorder %s29, 0
      %s32 = sadd.s32 %s31, 1
      %s33 = scalar_select %p30, %s31, %s32
      %p36 = pneg %p30
      %p37 = scmp.eq.s32.totalorder %s21, 1
      %p38 = por %p36, %p37
      %p39 = scmp.ne.s32.totalorder %s31, %s34
      %p40 = scmp.eq.s32.totalorder %s21, 0
      %p41 = por %p39, %p40
      %p42 = scmp.ne.s32.totalorder %s31, %s34
      %p43 = scmp.eq.s32.totalorder %s26, 1
      %p44 = por %p42, %p43
      %p45 = scmp.ne.s32.totalorder %s34, %s35
      %p46 = scmp.eq.s32.totalorder %s26, 0
      %p47 = por %p45, %p46
      %p48 = scmp.ne.s32.totalorder %s34, %s35
      %p49 = scmp.eq.s32.totalorder %s27, 1
      %p50 = por %p48, %p49
      %p52 = scmp.ne.s32.totalorder %s35, %s51
      %p53 = scmp.eq.s32.totalorder %s27, 0
      %p54 = por %p52, %p53
      %s56 = sadd.s32 %s55, 1
      %p59 = scmp.eq.s32.totalorder %s21, 1
      %p60 = scmp.ne.s32.totalorder %s55, %s57
      %p61 = scmp.eq.s32.totalorder %s21, 0
      %p62 = por %p60, %p61
      %p63 = scmp.ne.s32.totalorder %s55, %s57
      %p64 = scmp.eq.s32.totalorder %s26, 1
      %p65 = por %p63, %p64
      %p66 = scmp.ne.s32.totalorder %s57, %s58
      %p67 = scmp.eq.s32.totalorder %s26, 0
      %p68 = por %p66, %p67
      %p69 = scmp.ne.s32.totalorder %s57, %s58
      %p70 = scmp.eq.s32.totalorder %s27, 1
      %p71 = por %p69, %p70
      %p73 = scmp.ne.s32.totalorder %s58, %s72
      %p74 = scmp.eq.s32.totalorder %s27, 0
      %p75 = por %p73, %p74
      %s77 = sadd.s32 %s76, 1
      %p80 = scmp.eq.s32.totalorder %s21, 1
      %p81 = scmp.ne.s32.totalorder %s76, %s78
      %p82 = scmp.eq.s32.totalorder %s21, 0
      %p83 = por %p81, %p82
      %p84 = scmp.ne.s32.totalorder %s76, %s78
      %p85 = scmp.eq.s32.totalorder %s26, 1
      %p86 = por %p84, %p85
      %p87 = scmp.ne.s32.totalorder %s78, %s79
      %p88 = scmp.eq.s32.totalorder %s26, 0
      %p89 = por %p87, %p88
      %p90 = scmp.ne.s32.totalorder %s78, %s79
      %p91 = scmp.eq.s32.totalorder %s27, 1
      %p92 = por %p90, %p91
      %p94 = scmp.ne.s32.totalorder %s79, %s93
      %p95 = scmp.eq.s32.totalorder %s27, 0
      %p96 = por %p94, %p95
      %s98 = sadd.s32 %s97, 1
      %p101 = scmp.eq.s32.totalorder %s21, 1
      %p102 = scmp.ne.s32.totalorder %s97, %s99
      %p103 = scmp.eq.s32.totalorder %s21, 0
      %p104 = por %p102, %p103
      %p105 = scmp.ne.s32.totalorder %s97, %s99
      %p106 = scmp.eq.s32.totalorder %s26, 1
      %p107 = por %p105, %p106
      %p108 = scmp.ne.s32.totalorder %s99, %s100
      %p109 = scmp.eq.s32.totalorder %s26, 0
      %p110 = por %p108, %p109
      %p111 = scmp.ne.s32.totalorder %s99, %s100
      %p112 = scmp.eq.s32.totalorder %s27, 1
      %p113 = por %p111, %p112
      %p115 = scmp.ne.s32.totalorder %s100, %s114
      %p116 = scmp.eq.s32.totalorder %s27, 0
      %p117 = por %p115, %p116
      %s119 = sadd.s32 %s118, 1
      %p122 = scmp.eq.s32.totalorder %s21, 1
      %p123 = scmp.ne.s32.totalorder %s118, %s120
      %p124 = scmp.eq.s32.totalorder %s21, 0
      %p125 = por %p123, %p124
      %p126 = scmp.ne.s32.totalorder %s118, %s120
      %p127 = scmp.eq.s32.totalorder %s26, 1
      %p128 = por %p126, %p127
      %p129 = scmp.ne.s32.totalorder %s120, %s121
      %p130 = scmp.eq.s32.totalorder %s26, 0
      %p131 = por %p129, %p130
      %p132 = scmp.ne.s32.totalorder %s120, %s121
      %p133 = scmp.eq.s32.totalorder %s27, 1
      %p134 = por %p132, %p133
      %p136 = scmp.ne.s32.totalorder %s121, %s135
      %p137 = scmp.eq.s32.totalorder %s27, 0
      %p138 = por %p136, %p137
      %s140 = sadd.s32 %s139, 1
      %p143 = scmp.eq.s32.totalorder %s21, 1
      %p144 = scmp.ne.s32.totalorder %s139, %s141
      %p145 = scmp.eq.s32.totalorder %s21, 0
      %p146 = por %p144, %p145
      %p147 = scmp.ne.s32.totalorder %s139, %s141
      %p148 = scmp.eq.s32.totalorder %s26, 1
      %p149 = por %p147, %p148
      %p150 = scmp.ne.s32.totalorder %s141, %s142
      %p151 = scmp.eq.s32.totalorder %s26, 0
      %p152 = por %p150, %p151
      %p153 = scmp.ne.s32.totalorder %s141, %s142
      %p154 = scmp.eq.s32.totalorder %s27, 1
      %p155 = por %p153, %p154
      %p157 = scmp.ne.s32.totalorder %s142, %s156
      %p158 = scmp.eq.s32.totalorder %s27, 0
      %p159 = por %p157, %p158
      %s161 = sadd.s32 %s160, 1
      %p164 = scmp.eq.s32.totalorder %s21, 1
      %p165 = scmp.ne.s32.totalorder %s160, %s162
      %p166 = scmp.eq.s32.totalorder %s21, 0
      %p167 = por %p165, %p166
      %p168 = scmp.ne.s32.totalorder %s160, %s162
      %p169 = scmp.eq.s32.totalorder %s26, 1
      %p170 = por %p168, %p169
      %p171 = scmp.ne.s32.totalorder %s162, %s163
      %p172 = scmp.eq.s32.totalorder %s26, 0
      %p173 = por %p171, %p172
      %p174 = scmp.ne.s32.totalorder %s162, %s163
      %p175 = scmp.eq.s32.totalorder %s27, 1
      %p176 = por %p174, %p175
      %p178 = scmp.ne.s32.totalorder %s163, %s177
      %p179 = scmp.eq.s32.totalorder %s27, 0
      %p180 = por %p178, %p179
      %s182 = sadd.s32 %s181, 1
      %p185 = scmp.eq.s32.totalorder %s21, 1
      %p186 = scmp.ne.s32.totalorder %s181, %s183
      %p187 = scmp.eq.s32.totalorder %s21, 0
      %p188 = por %p186, %p187
      %p189 = scmp.ne.s32.totalorder %s181, %s183
      %p190 = scmp.eq.s32.totalorder %s26, 1
      %p191 = por %p189, %p190
      %p192 = scmp.ne.s32.totalorder %s183, %s184
      %p193 = scmp.eq.s32.totalorder %s26, 0
      %p194 = por %p192, %p193
      %p195 = scmp.ne.s32.totalorder %s183, %s184
      %p196 = scmp.eq.s32.totalorder %s27, 1
      %p197 = por %p195, %p196
      %p199 = scmp.ne.s32.totalorder %s184, %s198
      %p200 = scmp.eq.s32.totalorder %s27, 0
      %p201 = por %p199, %p200
      %s203 = sadd.s32 %s202, 1
      %p206 = scmp.eq.s32.totalorder %s21, 1
      %p207 = scmp.ne.s32.totalorder %s202, %s204
      %p208 = scmp.eq.s32.totalorder %s21, 0
      %p209 = por %p207, %p208
      %p210 = scmp.ne.s32.totalorder %s202, %s204
      %p211 = scmp.eq.s32.totalorder %s26, 1
      %p212 = por %p210, %p211
      %p213 = scmp.ne.s32.totalorder %s204, %s205
      %p214 = scmp.eq.s32.totalorder %s26, 0
      %p215 = por %p213, %p214
      %p216 = scmp.ne.s32.totalorder %s204, %s205
      %p217 = scmp.eq.s32.totalorder %s27, 1
      %p218 = por %p216, %p217
      %p220 = scmp.ne.s32.totalorder %s205, %s219
      %p221 = scmp.eq.s32.totalorder %s27, 0
      %p222 = por %p220, %p221
      %s223 = ssub.s32 %s21, %s28
      %p224 = scmp.eq.s32.totalorder %s223, 0
      %s226 = sadd.s32 %s225, 1
      %s227 = scalar_select %p224, %s225, %s226
      %p230 = pneg %p224
      %p231 = scmp.eq.s32.totalorder %s21, 1
      %p232 = por %p230, %p231
      %p233 = scmp.ne.s32.totalorder %s225, %s228
      %p234 = scmp.eq.s32.totalorder %s21, 0
      %p235 = por %p233, %p234
      %p236 = scmp.ne.s32.totalorder %s225, %s228
      %p237 = scmp.eq.s32.totalorder %s26, 1
      %p238 = por %p236, %p237
      %p239 = scmp.ne.s32.totalorder %s228, %s229
      %p240 = scmp.eq.s32.totalorder %s26, 0
      %p241 = por %p239, %p240
      %p242 = scmp.ne.s32.totalorder %s228, %s229
      %p243 = scmp.eq.s32.totalorder %s27, 1
      %p244 = por %p242, %p243
      %p246 = scmp.ne.s32.totalorder %s229, %s245
      %p247 = scmp.eq.s32.totalorder %s27, 0
      %p248 = por %p246, %p247
      %p249 = scmp.le.s32.totalorder 1, %s21
      %p250 = scmp.lt.s32.totalorder %s21, 3
      %p251 = pnand %p249, %p250
      %p252 = pneg %p251
      // Predicated region
      $region9: #{tpu_custom_call.1} parent=5 // pred_check
        _
      $region10: #{tpu_custom_call.1} parent=5 // pred_check_branch
        %254 = sbr.rel (%p251) target = $region12
      $region11: #{tpu_custom_call.1} parent=5 // pred_region
        %s255 = ssub.s32 %s21, 1
        // Predicated region
        $region13: #{tpu_custom_call.1} parent=11 // pred_check
          %p256 = pneg %p68
        $region14: #{tpu_custom_call.1} parent=11 // pred_check_branch
          %258 = sbr.rel (%p256) target = $region16
        $region15: #{tpu_custom_call.1} parent=11 // pred_region
          _
        $region16: #{tpu_custom_call.1} parent=11 // pred_fallthru
          _
        // Predicated region
        $region17: #{tpu_custom_call.1} parent=11 // pred_check
          %p259 = pneg %p89
        $region18: #{tpu_custom_call.1} parent=11 // pred_check_branch
          %261 = sbr.rel (%p259) target = $region20
        $region19: #{tpu_custom_call.1} parent=11 // pred_region
          _
        $region20: #{tpu_custom_call.1} parent=11 // pred_fallthru
          _
        // Predicated region
        $region21: #{tpu_custom_call.1} parent=11 // pred_check
          %p262 = pneg %p110
        $region22: #{tpu_custom_call.1} parent=11 // pred_check_branch
          %264 = sbr.rel (%p262) target = $region24
        $region23: #{tpu_custom_call.1} parent=11 // pred_region
          %266 = vsyncadd [#allocation3], 0
          %s267 = sshll.u32 %s3, 4
          %s268 = int_to_ptr.hbm [resolvable:$true] %s267
          %s269 = sshll.u32 [#allocation2], 4
          %s270 = int_to_ptr.vmem [resolvable:$true] %s269
          %275 = dma.hbm_to_vmem [thread:$0]  %s268, 256, %s270, [#allocation3], 64, 64, 4
        $region24: #{tpu_custom_call.1} parent=11 // pred_fallthru
          _
        // Predicated region
        $region25: #{tpu_custom_call.1} parent=11 // pred_check
          %p276 = pneg %p131
        $region26: #{tpu_custom_call.1} parent=11 // pred_check_branch
          %278 = sbr.rel (%p276) target = $region28
        $region27: #{tpu_custom_call.1} parent=11 // pred_region
          %280 = vsyncadd [#allocation6], 0
          %s281 = sshll.u32 %s4, 4
          %s282 = int_to_ptr.hbm [resolvable:$true] %s281
          %s283 = sshll.u32 [#allocation5], 4
          %s284 = int_to_ptr.vmem [resolvable:$true] %s283
          %289 = dma.hbm_to_vmem [thread:$0]  %s282, 256, %s284, [#allocation6], 64, 64, 4
        $region28: #{tpu_custom_call.1} parent=11 // pred_fallthru
          _
        // Predicated region
        $region29: #{tpu_custom_call.1} parent=11 // pred_check
          %p290 = pneg %p152
        $region30: #{tpu_custom_call.1} parent=11 // pred_check_branch
          %292 = sbr.rel (%p290) target = $region32
        $region31: #{tpu_custom_call.1} parent=11 // pred_region
          %294 = vsyncadd [#allocation6], 0
          %s295 = sshll.u32 %s5, 4
          %s296 = int_to_ptr.hbm [resolvable:$true] %s295
          %s297 = sshll.u32 [#allocation7], 4
          %s298 = int_to_ptr.vmem [resolvable:$true] %s297
          %303 = dma.hbm_to_vmem [thread:$0]  %s296, 256, %s298, [#allocation6], 64, 64, 4
        $region32: #{tpu_custom_call.1} parent=11 // pred_fallthru
          _
        // Predicated region
        $region33: #{tpu_custom_call.1} parent=11 // pred_check
          %p304 = pneg %p173
        $region34: #{tpu_custom_call.1} parent=11 // pred_check_branch
          %306 = sbr.rel (%p304) target = $region36
        $region35: #{tpu_custom_call.1} parent=11 // pred_region
          _
        $region36: #{tpu_custom_call.1} parent=11 // pred_fallthru
          _
        // Predicated region
        $region37: #{tpu_custom_call.1} parent=11 // pred_check
          %p307 = pneg %p194
        $region38: #{tpu_custom_call.1} parent=11 // pred_check_branch
          %309 = sbr.rel (%p307) target = $region40
        $region39: #{tpu_custom_call.1} parent=11 // pred_region
          %311 = vsyncadd [#allocation9], 0
          %s312 = sshll.u32 %s7, 4
          %s313 = int_to_ptr.hbm [resolvable:$true] %s312
          %s314 = sshll.u32 [#allocation8], 4
          %s315 = int_to_ptr.vmem [resolvable:$true] %s314
          %320 = dma.hbm_to_vmem [thread:$0]  %s313, 256, %s315, [#allocation9], 128, 128, 8
        $region40: #{tpu_custom_call.1} parent=11 // pred_fallthru
          _
        // Predicated region
        $region41: #{tpu_custom_call.1} parent=11 // pred_check
          %p321 = pneg %p215
        $region42: #{tpu_custom_call.1} parent=11 // pred_check_branch
          %323 = sbr.rel (%p321) target = $region44
        $region43: #{tpu_custom_call.1} parent=11 // pred_region
          _
        $region44: #{tpu_custom_call.1} parent=11 // pred_fallthru
          _
      $region12: #{tpu_custom_call.1} parent=5 // pred_fallthru
        _
      %p324 = scmp.lt.s32.totalorder %s21, 2
      // Predicated region
      $region45: #{tpu_custom_call.1} parent=5 // pred_check
        %p325 = pneg %p324
      $region46: #{tpu_custom_call.1} parent=5 // pred_check_branch
        %327 = sbr.rel (%p325) target = $region48
      $region47: #{tpu_custom_call.1} parent=5 // pred_region
        // Predicated region
        $region49: #{tpu_custom_call.1} parent=47 // pred_check
          %p328 = pneg %p41
        $region50: #{tpu_custom_call.1} parent=47 // pred_check_branch
          %330 = sbr.rel (%p328) target = $region52
        $region51: #{tpu_custom_call.1} parent=47 // pred_region
          %p331 = scmp.lt.s32.totalorder %s21, 1
          %s332 = scalar_select %p331, %s21, 1
          %s333 = smul.addr %s332, 8
          %s334 = scalar_lea.vmem %s0, %s333
        $region52: #{tpu_custom_call.1} parent=47 // pred_fallthru
          _
      $region48: #{tpu_custom_call.1} parent=5 // pred_fallthru
        _
      %p335 = scmp.le.s32.totalorder 1, %s21
      %p336 = scmp.lt.s32.totalorder %s21, 3
      %p337 = pnand %p335, %p336
      %p338 = pneg %p337
      // Predicated region
      $region53: #{tpu_custom_call.1} parent=5 // pred_check
        _
      $region54: #{tpu_custom_call.1} parent=5 // pred_check_branch
        %340 = sbr.rel (%p337) target = $region56
      $region55: #{tpu_custom_call.1} parent=5 // pred_region
        %s341 = ssub.s32 %s21, 1
        // Predicated region
        $region57: #{tpu_custom_call.1} parent=55 // pred_check
          %p342 = pneg %p110
        $region58: #{tpu_custom_call.1} parent=55 // pred_check_branch
          %344 = sbr.rel (%p342) target = $region60
        $region59: #{tpu_custom_call.1} parent=55 // pred_region
          %346 = dma.done [#allocation3], 256
        $region60: #{tpu_custom_call.1} parent=55 // pred_fallthru
          _
        // Predicated region
        $region61: #{tpu_custom_call.1} parent=55 // pred_check
          %p347 = pneg %p131
        $region62: #{tpu_custom_call.1} parent=55 // pred_check_branch
          %349 = sbr.rel (%p347) target = $region64
        $region63: #{tpu_custom_call.1} parent=55 // pred_region
          %351 = dma.done [#allocation6], 256
        $region64: #{tpu_custom_call.1} parent=55 // pred_fallthru
          _
        // Predicated region
        $region65: #{tpu_custom_call.1} parent=55 // pred_check
          %p352 = pneg %p152
        $region66: #{tpu_custom_call.1} parent=55 // pred_check_branch
          %354 = sbr.rel (%p352) target = $region68
        $region67: #{tpu_custom_call.1} parent=55 // pred_region
          %356 = dma.done [#allocation6], 256
        $region68: #{tpu_custom_call.1} parent=55 // pred_fallthru
          _
        // Predicated region
        $region69: #{tpu_custom_call.1} parent=55 // pred_check
          %p357 = pneg %p194
        $region70: #{tpu_custom_call.1} parent=55 // pred_check_branch
          %359 = sbr.rel (%p357) target = $region72
        $region71: #{tpu_custom_call.1} parent=55 // pred_region
          %361 = dma.done [#allocation9], 256
        $region72: #{tpu_custom_call.1} parent=55 // pred_fallthru
          _
        %p362 = scmp.lt.s32.totalorder %s26, 1
        %s363 = scalar_select %p362, %s26, 1
        %s364 = smul.addr %s363, 8
        %s365 = scalar_lea.vmem %s0, %s364
        %p366 = pneg %p47
        %p367 = pneg %p44
        %p368 = pneg %p68
        %p369 = pneg %p65
        %p370 = pneg %p89
        %p371 = pneg %p86
        %p372 = pneg %p110
        %p373 = pneg %p107
        %p374 = pneg %p131
        %p375 = pneg %p128
        %p376 = pneg %p152
        %p377 = pneg %p149
        %p378 = pneg %p173
        %p379 = pneg %p170
        %p380 = pneg %p194
        %p381 = pneg %p191
        %p382 = pneg %p215
        %p383 = pneg %p212
        %p384 = pneg %p241
        %p385 = pneg %p238
        %s386 = sand.u32 %s228, 1
        %s387 = scalar_lea.sflag [#allocation4], %s386
        %s388 = sand.u32 %s228, 1
        %s389 = smul.addr %s388, 8
        %s390 = scalar_lea.vmem [#allocation10], %s389
        %p391 = scmp.lt.s32.totalorder %s26, 1
        %s392 = scalar_select %p391, %s26, 1
        %s393 = smul.addr %s392, 8
        %s394 = scalar_lea.vmem %s0, %s393
        %v396 = vld [vmem:[%s394] sm:$0xff]
        %v397 = vld [vmem:[#allocation8] sm:$0xff]
        %v398 = vld [vmem:[#allocation8 + $0x8] sm:$0xff]
        %v399 = vpack.c.bf16 %v396, %v396
        %v400 = vld [vmem:[%s1] sm:$0xf]
        %v401 = vld [vmem:[%s1 + $0x4] sm:$0xf]
        %v402 = vld [vmem:[%s1 + $0x8] sm:$0xf]
        %v403 = vld [vmem:[%s1 + $0xc] sm:$0xf]
        %v408 = vunpack.c.l.b16 %v400
        %v409 = vunpack.c.l.b16 %v401
        %v410 = vunpack.c.l.b16 %v402
        %v411 = vunpack.c.l.b16 %v403
        %v412 = vpack.c.b16 %v409, %v408
        %v413 = vpack.c.b16 %v411, %v410
        %vm416 = vcmask 261120
        %v418 = vsel %vm416, %v399, 0
        %420 = vmatpush.bf16.msra.mxu0 0
        %421 = vmatpush.bf16.msra.mxu0 0
        %422 = vmatpush.bf16.msra.mxu0 0
        %423 = vmatpush.bf16.msra.mxu0 0
        %424 = vmatpush.bf16.msra.mxu0 0
        %425 = vmatpush.bf16.msra.mxu0 0
        %426 = vmatpush.bf16.msra.mxu0 %v413
        %427 = vmatpush.bf16.msra.mxu0 %v412
        %428 = vmatmul.bf16.gmra.mxu0 %v418
        %v429 = vpop.f32.mrf.mxu0
        %v430 = vadd.f32 0.0, %v429
        %v431 = vpop.f32.mrf.mxu0
        %432 = vdwg.mxu0
        %v433 = vperm.slane %v397, 0
        %v434 = vadd.f32 %v430, %v433
        %v435 = vperm.slane %v397, 1
        %437 = vrot.lane.b32.xlu0 %v435, 32
        %v438 = vpop.permute.xlu0 %437
        %v440 = vadd.f32 %v430, %v438
        %v441 = vperm.slane %v397, 2
        %443 = vrot.lane.b32.xlu0 %v441, 64
        %v444 = vpop.permute.xlu0 %443
        %v446 = vadd.f32 %v430, %v444
        %v447 = vmul.f32 %v434, 0.35355338
        %v448 = vpack.c.bf16 %v447, %v447
        %v449 = vpack.c.bf16 %v440, %v440
        %v450 = vpack.c.bf16 %v446, %v446
        %452 = vrot.lane.b32.xlu0 %v449, 96
        %v453 = vpop.permute.xlu0 %452
        %vm454 = vcmask 64512
        %v456 = vsel %vm454, %v448, 0
        %v459 = vsel %vm454, %v453, 0
        %461 = vmatpush.bf16.xpose.msra.mxu0 0
        %462 = vmatpush.bf16.xpose.msra.mxu0 0
        %463 = vmatpush.bf16.xpose.msra.mxu0 0
        %464 = vmatpush.bf16.xpose.msra.mxu0 0
        %465 = vmatpush.bf16.xpose.msra.mxu0 0
        %466 = vmatpush.bf16.xpose.msra.mxu0 0
        %467 = vmatpush.bf16.xpose.msra.mxu0 0
        %468 = vmatpush.bf16.xpose.msra.mxu0 %v459
        %469 = vmatmul.bf16.gmra.mxu0 %v456
        %v470 = vpop.f32.mrf.mxu0
        %v471 = vadd.f32 0.0, %v470
        %v472 = vpop.f32.mrf.mxu0
        %473 = vdwg.mxu0
        %v474 = vsel %vm454, %v471, -inf
        %475 = vmax.xlane.f32.xlu0 %v474
        %v476 = vpop.xlane.xlu0 %475
        %v477 = vsub.f32 %v471, %v476
        %v478 = vmul.f32 %v477, 1.442695
        %v479 = vpow.pop %v478
        %v480 = vsel %vm454, %v479, 0.0
        %481 = vadd.xlane.f32.xlu0 %v480
        %v482 = vpop.xlane.xlu0 %481
        %v483 = vrcp.pop %v482
        %v484 = vmul.f32 %v479, %v483
        %v485 = vpack.c.bf16 %v484, %v484
        %487 = vrot.lane.b32.xlu0 %v450, 64
        %v488 = vpop.permute.xlu0 %487
        %v490 = vsel %vm454, %v485, 0
        %vm492 = vcmask 1043456
        %v494 = vsel %vm492, %v488, 0
        %496 = vmatpush.bf16.msra.mxu0 0
        %497 = vmatpush.bf16.msra.mxu0 0
        %498 = vmatpush.bf16.msra.mxu0 0
        %499 = vmatpush.bf16.msra.mxu0 0
        %500 = vmatpush.bf16.msra.mxu0 0
        %501 = vmatpush.bf16.msra.mxu0 0
        %502 = vmatpush.bf16.msra.mxu0 0
        %503 = vmatpush.bf16.msra.mxu0 %v494
        %504 = vmatmul.bf16.gmra.mxu0 %v490
        %v505 = vpop.f32.mrf.mxu0
        %v506 = vadd.f32 0.0, %v505
        %v507 = vpop.f32.mrf.mxu0
        %508 = vdwg.mxu0
        %v509 = vpack.c.bf16 %v506, %v506
        %v510 = vld [vmem:[%s2] sm:$0xf]
        %512 = vrot.lane.b32.xlu0 %v448, 120
        %v513 = vpop.permute.xlu0 %512
        %514 = vrot.lane.b32.xlu0 %v449, 88
        %v515 = vpop.permute.xlu0 %514
        %v517 = vsel %vm454, %v513, 0
        %v520 = vsel %vm454, %v515, 0
        %522 = vmatpush.bf16.xpose.msra.mxu0 0
        %523 = vmatpush.bf16.xpose.msra.mxu0 0
        %524 = vmatpush.bf16.xpose.msra.mxu0 0
        %525 = vmatpush.bf16.xpose.msra.mxu0 0
        %526 = vmatpush.bf16.xpose.msra.mxu0 0
        %527 = vmatpush.bf16.xpose.msra.mxu0 0
        %528 = vmatpush.bf16.xpose.msra.mxu0 0
        %529 = vmatpush.bf16.xpose.msra.mxu0 %v520
        %530 = vmatmul.bf16.gmra.mxu0 %v517
        %v531 = vpop.f32.mrf.mxu0
        %v532 = vadd.f32 0.0, %v531
        %v533 = vpop.f32.mrf.mxu0
        %534 = vdwg.mxu0
        %v535 = vsel %vm454, %v532, -inf
        %536 = vmax.xlane.f32.xlu0 %v535
        %v537 = vpop.xlane.xlu0 %536
        %v538 = vsub.f32 %v532, %v537
        %v539 = vmul.f32 %v538, 1.442695
        %v540 = vpow.pop %v539
        %v541 = vsel %vm454, %v540, 0.0
        %542 = vadd.xlane.f32.xlu0 %v541
        %v543 = vpop.xlane.xlu0 %542
        %v544 = vrcp.pop %v543
        %v545 = vmul.f32 %v540, %v544
        %v546 = vpack.c.bf16 %v545, %v545
        %547 = vrot.lane.b32.xlu0 %v450, 56
        %v548 = vpop.permute.xlu0 %547
        %v550 = vsel %vm454, %v546, 0
        %v553 = vsel %vm492, %v548, 0
        %555 = vmatpush.bf16.msra.mxu0 0
        %556 = vmatpush.bf16.msra.mxu0 0
        %557 = vmatpush.bf16.msra.mxu0 0
        %558 = vmatpush.bf16.msra.mxu0 0
        %559 = vmatpush.bf16.msra.mxu0 0
        %560 = vmatpush.bf16.msra.mxu0 0
        %561 = vmatpush.bf16.msra.mxu0 0
        %562 = vmatpush.bf16.msra.mxu0 %v553
        %563 = vmatmul.bf16.gmra.mxu0 %v550
        %v564 = vpop.f32.mrf.mxu0
        %v565 = vadd.f32 0.0, %v564
        %v566 = vpop.f32.mrf.mxu0
        %567 = vdwg.mxu0
        %v568 = vpack.c.bf16 %v565, %v565
        %s569 = scalar_lea.vmem %s2, 4
        %v570 = vld [vmem:[%s569] sm:$0xf]
        %v572 = vsel %vm454, %v568, 0
        %v575 = vsel %vm492, %v570, 0
        %577 = vmatpush.bf16.msra.mxu0 0
        %578 = vmatpush.bf16.msra.mxu0 0
        %579 = vmatpush.bf16.msra.mxu0 0
        %580 = vmatpush.bf16.msra.mxu0 0
        %581 = vmatpush.bf16.msra.mxu0 0
        %582 = vmatpush.bf16.msra.mxu0 0
        %583 = vmatpush.bf16.msra.mxu0 0
        %584 = vmatpush.bf16.msra.mxu0 %v575
        %585 = vmatmul.bf16.gmra.mxu0 %v572
        %v586 = vpop.f32.mrf.mxu0
        %v587 = vadd.f32 0.0, %v586
        %v588 = vpop.f32.mrf.mxu0
        %589 = vdwg.mxu0
        %v591 = vsel %vm454, %v509, 0
        %v594 = vsel %vm492, %v510, 0
        %596 = vmatpush.bf16.msra.mxu0 0
        %597 = vmatpush.bf16.msra.mxu0 0
        %598 = vmatpush.bf16.msra.mxu0 0
        %599 = vmatpush.bf16.msra.mxu0 0
        %600 = vmatpush.bf16.msra.mxu0 0
        %601 = vmatpush.bf16.msra.mxu0 0
        %602 = vmatpush.bf16.msra.mxu0 0
        %603 = vmatpush.bf16.msra.mxu0 %v594
        %604 = vmatmul.bf16.gmra.mxu0 %v591
        %v605 = vpop.f32.mrf.mxu0
        %v606 = vadd.f32 %v587, %v605
        %v607 = vpop.f32.mrf.mxu0
        %608 = vdwg.mxu0
        %609 = vrot.lane.b32.xlu0 %v448, 112
        %v610 = vpop.permute.xlu0 %609
        %611 = vrot.lane.b32.xlu0 %v449, 80
        %v612 = vpop.permute.xlu0 %611
        %v614 = vsel %vm454, %v610, 0
        %v617 = vsel %vm454, %v612, 0
        %619 = vmatpush.bf16.xpose.msra.mxu0 0
        %620 = vmatpush.bf16.xpose.msra.mxu0 0
        %621 = vmatpush.bf16.xpose.msra.mxu0 0
        %622 = vmatpush.bf16.xpose.msra.mxu0 0
        %623 = vmatpush.bf16.xpose.msra.mxu0 0
        %624 = vmatpush.bf16.xpose.msra.mxu0 0
        %625 = vmatpush.bf16.xpose.msra.mxu0 0
        %626 = vmatpush.bf16.xpose.msra.mxu0 %v617
        %627 = vmatmul.bf16.gmra.mxu0 %v614
        %v628 = vpop.f32.mrf.mxu0
        %v629 = vadd.f32 0.0, %v628
        %v630 = vpop.f32.mrf.mxu0
        %631 = vdwg.mxu0
        %v632 = vsel %vm454, %v629, -inf
        %633 = vmax.xlane.f32.xlu0 %v632
        %v634 = vpop.xlane.xlu0 %633
        %v635 = vsub.f32 %v629, %v634
        %v636 = vmul.f32 %v635, 1.442695
        %v637 = vpow.pop %v636
        %v638 = vsel %vm454, %v637, 0.0
        %639 = vadd.xlane.f32.xlu0 %v638
        %v640 = vpop.xlane.xlu0 %639
        %v641 = vrcp.pop %v640
        %v642 = vmul.f32 %v637, %v641
        %v643 = vpack.c.bf16 %v642, %v642
        %644 = vrot.lane.b32.xlu0 %v450, 48
        %v645 = vpop.permute.xlu0 %644
        %v647 = vsel %vm454, %v643, 0
        %v650 = vsel %vm492, %v645, 0
        %652 = vmatpush.bf16.msra.mxu0 0
        %653 = vmatpush.bf16.msra.mxu0 0
        %654 = vmatpush.bf16.msra.mxu0 0
        %655 = vmatpush.bf16.msra.mxu0 0
        %656 = vmatpush.bf16.msra.mxu0 0
        %657 = vmatpush.bf16.msra.mxu0 0
        %658 = vmatpush.bf16.msra.mxu0 0
        %659 = vmatpush.bf16.msra.mxu0 %v650
        %660 = vmatmul.bf16.gmra.mxu0 %v647
        %v661 = vpop.f32.mrf.mxu0
        %v662 = vadd.f32 0.0, %v661
        %v663 = vpop.f32.mrf.mxu0
        %664 = vdwg.mxu0
        %v665 = vpack.c.bf16 %v662, %v662
        %s666 = scalar_lea.vmem %s2, 8
        %v667 = vld [vmem:[%s666] sm:$0xf]
        %v669 = vsel %vm454, %v665, 0
        %v672 = vsel %vm492, %v667, 0
        %674 = vmatpush.bf16.msra.mxu0 0
        %675 = vmatpush.bf16.msra.mxu0 0
        %676 = vmatpush.bf16.msra.mxu0 0
        %677 = vmatpush.bf16.msra.mxu0 0
        %678 = vmatpush.bf16.msra.mxu0 0
        %679 = vmatpush.bf16.msra.mxu0 0
        %680 = vmatpush.bf16.msra.mxu0 0
        %681 = vmatpush.bf16.msra.mxu0 %v672
        %682 = vmatmul.bf16.gmra.mxu0 %v669
        %v683 = vpop.f32.mrf.mxu0
        %v684 = vadd.f32 0.0, %v683
        %v685 = vpop.f32.mrf.mxu0
        %686 = vdwg.mxu0
        %v687 = vadd.f32 %v606, %v684
        %688 = vrot.lane.b32.xlu0 %v448, 104
        %v689 = vpop.permute.xlu0 %688
        %690 = vrot.lane.b32.xlu0 %v449, 72
        %v691 = vpop.permute.xlu0 %690
        %v693 = vsel %vm454, %v689, 0
        %v696 = vsel %vm454, %v691, 0
        %698 = vmatpush.bf16.xpose.msra.mxu0 0
        %699 = vmatpush.bf16.xpose.msra.mxu0 0
        %700 = vmatpush.bf16.xpose.msra.mxu0 0
        %701 = vmatpush.bf16.xpose.msra.mxu0 0
        %702 = vmatpush.bf16.xpose.msra.mxu0 0
        %703 = vmatpush.bf16.xpose.msra.mxu0 0
        %704 = vmatpush.bf16.xpose.msra.mxu0 0
        %705 = vmatpush.bf16.xpose.msra.mxu0 %v696
        %706 = vmatmul.bf16.gmra.mxu0 %v693
        %v707 = vpop.f32.mrf.mxu0
        %v708 = vadd.f32 0.0, %v707
        %v709 = vpop.f32.mrf.mxu0
        %710 = vdwg.mxu0
        %v711 = vsel %vm454, %v708, -inf
        %712 = vmax.xlane.f32.xlu0 %v711
        %v713 = vpop.xlane.xlu0 %712
        %v714 = vsub.f32 %v708, %v713
        %v715 = vmul.f32 %v714, 1.442695
        %v716 = vpow.pop %v715
        %v717 = vsel %vm454, %v716, 0.0
        %718 = vadd.xlane.f32.xlu0 %v717
        %v719 = vpop.xlane.xlu0 %718
        %v720 = vrcp.pop %v719
        %v721 = vmul.f32 %v716, %v720
        %v722 = vpack.c.bf16 %v721, %v721
        %723 = vrot.lane.b32.xlu0 %v450, 40
        %v724 = vpop.permute.xlu0 %723
        %v726 = vsel %vm454, %v722, 0
        %v729 = vsel %vm492, %v724, 0
        %731 = vmatpush.bf16.msra.mxu0 0
        %732 = vmatpush.bf16.msra.mxu0 0
        %733 = vmatpush.bf16.msra.mxu0 0
        %734 = vmatpush.bf16.msra.mxu0 0
        %735 = vmatpush.bf16.msra.mxu0 0
        %736 = vmatpush.bf16.msra.mxu0 0
        %737 = vmatpush.bf16.msra.mxu0 0
        %738 = vmatpush.bf16.msra.mxu0 %v729
        %739 = vmatmul.bf16.gmra.mxu0 %v726
        %v740 = vpop.f32.mrf.mxu0
        %v741 = vadd.f32 0.0, %v740
        %v742 = vpop.f32.mrf.mxu0
        %743 = vdwg.mxu0
        %v744 = vpack.c.bf16 %v741, %v741
        %s745 = scalar_lea.vmem %s2, 12
        %v746 = vld [vmem:[%s745] sm:$0xf]
        %v748 = vsel %vm454, %v744, 0
        %v751 = vsel %vm492, %v746, 0
        %753 = vmatpush.bf16.msra.mxu0 0
        %754 = vmatpush.bf16.msra.mxu0 0
        %755 = vmatpush.bf16.msra.mxu0 0
        %756 = vmatpush.bf16.msra.mxu0 0
        %757 = vmatpush.bf16.msra.mxu0 0
        %758 = vmatpush.bf16.msra.mxu0 0
        %759 = vmatpush.bf16.msra.mxu0 0
        %760 = vmatpush.bf16.msra.mxu0 %v751
        %761 = vmatmul.bf16.gmra.mxu0 %v748
        %v762 = vpop.f32.mrf.mxu0
        %v763 = vadd.f32 0.0, %v762
        %v764 = vpop.f32.mrf.mxu0
        %765 = vdwg.mxu0
        %v766 = vadd.f32 %v687, %v763
        %v767 = vperm.slane %v397, 3
        %v768 = vadd.f32 %v766, %v767
        %v769 = vadd.f32 %v768, %v396
        %v770 = vsel %vm416, %v769, 0.0
        %771 = vadd.xlane.f32.xlu0 %v770
        %v772 = vpop.xlane.xlu0 %771
        %v773 = vrcp.pop 32.0
        %v774 = vmul.f32 32.0, %v773
        %v775 = vsub.f32 1.0, %v774
        %v776 = vmul.f32 %v773, %v775
        %v777 = vadd.f32 %v773, %v776
        %vm778 = vweird.f32 %v773
        %v779 = vsel %vm778, %v773, %v777
        %v780 = vmul.f32 %v772, %v779
        %v781 = vsub.f32 %v769, %v780
        %v782 = vmul.f32 %v781, %v781
        %v783 = vsel %vm416, %v782, 0.0
        %784 = vadd.xlane.f32.xlu0 %v783
        %v785 = vpop.xlane.xlu0 %784
        %v786 = vmul.f32 %v785, %v779
        %v787 = vadd.f32 %v786, 1e-05
        %v788 = vrsqrt.pop %v787
        %v789 = vmul.f32 %v788, %v787
        %v790 = vmul.f32 %v789, %v788
        %v791 = vmul.f32 0.5, %v790
        %v792 = vsub.f32 1.5, %v791
        %v793 = vmul.f32 %v788, %v792
        %vm794 = vweird.f32 %v787
        %vm795 = vweird.f32 %v788
        %vm796 = vmor %vm794, %vm795
        %v797 = vsel %vm796, %v788, %v793
        %v798 = vmul.f32 %v781, %v797
        %v799 = vperm.slane %v398, 0
        %v800 = vmul.f32 %v798, %v799
        %v801 = vperm.slane %v398, 1
        %v802 = vadd.f32 %v800, %v801
        %v803 = vld [vmem:[#allocation2] sm:$0xf]
        %v804 = vld [vmem:[#allocation2 + $0x4] sm:$0xf]
        %v805 = vld [vmem:[#allocation2 + $0x8] sm:$0xf]
        %v806 = vld [vmem:[#allocation2 + $0xc] sm:$0xf]
        %v807 = vpack.c.bf16 %v802, %v802
        %v808 = vperm.slane %v397, 4
        %v813 = vunpack.c.l.b16 %v803
        %v814 = vunpack.c.l.b16 %v804
        %v815 = vunpack.c.l.b16 %v805
        %v816 = vunpack.c.l.b16 %v806
        %v817 = vpack.c.b16 %v814, %v813
        %v818 = vpack.c.b16 %v816, %v815
        %v822 = vsel %vm416, %v807, 0
        %824 = vmatpush.bf16.msra.mxu0 0
        %825 = vmatpush.bf16.msra.mxu0 0
        %826 = vmatpush.bf16.msra.mxu0 0
        %827 = vmatpush.bf16.msra.mxu0 0
        %828 = vmatpush.bf16.msra.mxu0 0
        %829 = vmatpush.bf16.msra.mxu0 0
        %830 = vmatpush.bf16.msra.mxu0 %v818
        %831 = vmatpush.bf16.msra.mxu0 %v817
        %832 = vmatmul.bf16.gmra.mxu0 %v822
        %v833 = vpop.f32.mrf.mxu0
        %v834 = vadd.f32 %v808, %v833
        %v835 = vpop.f32.mrf.mxu0
        %836 = vdwg.mxu0
        %837 = vrot.lane.b32.xlu0 %v817, 96
        %v838 = vpop.permute.xlu0 %837
        %839 = vrot.lane.b32.xlu0 %v818, 96
        %v840 = vpop.permute.xlu0 %839
        %843 = vmatpush.bf16.msra.mxu0 0
        %844 = vmatpush.bf16.msra.mxu0 0
        %845 = vmatpush.bf16.msra.mxu0 0
        %846 = vmatpush.bf16.msra.mxu0 0
        %847 = vmatpush.bf16.msra.mxu0 0
        %848 = vmatpush.bf16.msra.mxu0 0
        %849 = vmatpush.bf16.msra.mxu0 %v840
        %850 = vmatpush.bf16.msra.mxu0 %v838
        %851 = vmatmul.bf16.gmra.mxu0 %v418
        %v852 = vpop.f32.mrf.mxu0
        %v853 = vadd.f32 0.0, %v852
        %v854 = vpop.f32.mrf.mxu0
        %855 = vdwg.mxu0
        %v856 = vperm.slane %v397, 5
        %v857 = vadd.f32 %v853, %v856
        %v858 = vperm.slane %v397, 6
        %860 = vrot.lane.b32.xlu0 %v858, 32
        %v861 = vpop.permute.xlu0 %860
        %v863 = vadd.f32 %v853, %v861
        %v864 = vmul.f32 %v834, 0.35355338
        %v865 = vpack.c.bf16 %v864, %v864
        %v866 = vpack.c.bf16 %v857, %v857
        %v867 = vpack.c.bf16 %v863, %v863
        %v869 = vsel %vm454, %v865, 0
        %v872 = vsel %vm454, %v866, 0
        %874 = vmatpush.bf16.xpose.msra.mxu0 0
        %875 = vmatpush.bf16.xpose.msra.mxu0 0
        %876 = vmatpush.bf16.xpose.msra.mxu0 0
        %877 = vmatpush.bf16.xpose.msra.mxu0 0
        %878 = vmatpush.bf16.xpose.msra.mxu0 0
        %879 = vmatpush.bf16.xpose.msra.mxu0 0
        %880 = vmatpush.bf16.xpose.msra.mxu0 0
        %881 = vmatpush.bf16.xpose.msra.mxu0 %v872
        %882 = vmatmul.bf16.gmra.mxu0 %v869
        %v883 = vpop.f32.mrf.mxu0
        %v884 = vadd.f32 0.0, %v883
        %v885 = vpop.f32.mrf.mxu0
        %886 = vdwg.mxu0
        %v887 = vsel %vm454, %v884, -inf
        %888 = vmax.xlane.f32.xlu0 %v887
        %v889 = vpop.xlane.xlu0 %888
        %v890 = vsub.f32 %v884, %v889
        %v891 = vmul.f32 %v890, 1.442695
        %v892 = vpow.pop %v891
        %v893 = vsel %vm454, %v892, 0.0
        %894 = vadd.xlane.f32.xlu0 %v893
        %v895 = vpop.xlane.xlu0 %894
        %v896 = vrcp.pop %v895
        %v897 = vmul.f32 %v892, %v896
        %v898 = vpack.c.bf16 %v897, %v897
        %900 = vrot.lane.b32.xlu0 %v867, 96
        %v901 = vpop.permute.xlu0 %900
        %v903 = vsel %vm454, %v898, 0
        %v906 = vsel %vm492, %v901, 0
        %908 = vmatpush.bf16.msra.mxu0 0
        %909 = vmatpush.bf16.msra.mxu0 0
        %910 = vmatpush.bf16.msra.mxu0 0
        %911 = vmatpush.bf16.msra.mxu0 0
        %912 = vmatpush.bf16.msra.mxu0 0
        %913 = vmatpush.bf16.msra.mxu0 0
        %914 = vmatpush.bf16.msra.mxu0 0
        %915 = vmatpush.bf16.msra.mxu0 %v906
        %916 = vmatmul.bf16.gmra.mxu0 %v903
        %v917 = vpop.f32.mrf.mxu0
        %v918 = vadd.f32 0.0, %v917
        %v919 = vpop.f32.mrf.mxu0
        %920 = vdwg.mxu0
        %v921 = vpack.c.bf16 %v918, %v918
        %v922 = vld [vmem:[#allocation5] sm:$0xf]
        %924 = vrot.lane.b32.xlu0 %v865, 120
        %v925 = vpop.permute.xlu0 %924
        %927 = vrot.lane.b32.xlu0 %v866, 120
        %v928 = vpop.permute.xlu0 %927
        %v930 = vsel %vm454, %v925, 0
        %v933 = vsel %vm454, %v928, 0
        %935 = vmatpush.bf16.xpose.msra.mxu0 0
        %936 = vmatpush.bf16.xpose.msra.mxu0 0
        %937 = vmatpush.bf16.xpose.msra.mxu0 0
        %938 = vmatpush.bf16.xpose.msra.mxu0 0
        %939 = vmatpush.bf16.xpose.msra.mxu0 0
        %940 = vmatpush.bf16.xpose.msra.mxu0 0
        %941 = vmatpush.bf16.xpose.msra.mxu0 0
        %942 = vmatpush.bf16.xpose.msra.mxu0 %v933
        %943 = vmatmul.bf16.gmra.mxu0 %v930
        %v944 = vpop.f32.mrf.mxu0
        %v945 = vadd.f32 0.0, %v944
        %v946 = vpop.f32.mrf.mxu0
        %947 = vdwg.mxu0
        %v948 = vsel %vm454, %v945, -inf
        %949 = vmax.xlane.f32.xlu0 %v948
        %v950 = vpop.xlane.xlu0 %949
        %v951 = vsub.f32 %v945, %v950
        %v952 = vmul.f32 %v951, 1.442695
        %v953 = vpow.pop %v952
        %v954 = vsel %vm454, %v953, 0.0
        %955 = vadd.xlane.f32.xlu0 %v954
        %v956 = vpop.xlane.xlu0 %955
        %v957 = vrcp.pop %v956
        %v958 = vmul.f32 %v953, %v957
        %v959 = vpack.c.bf16 %v958, %v958
        %960 = vrot.lane.b32.xlu0 %v867, 88
        %v961 = vpop.permute.xlu0 %960
        %v963 = vsel %vm454, %v959, 0
        %v966 = vsel %vm492, %v961, 0
        %968 = vmatpush.bf16.msra.mxu0 0
        %969 = vmatpush.bf16.msra.mxu0 0
        %970 = vmatpush.bf16.msra.mxu0 0
        %971 = vmatpush.bf16.msra.mxu0 0
        %972 = vmatpush.bf16.msra.mxu0 0
        %973 = vmatpush.bf16.msra.mxu0 0
        %974 = vmatpush.bf16.msra.mxu0 0
        %975 = vmatpush.bf16.msra.mxu0 %v966
        %976 = vmatmul.bf16.gmra.mxu0 %v963
        %v977 = vpop.f32.mrf.mxu0
        %v978 = vadd.f32 0.0, %v977
        %v979 = vpop.f32.mrf.mxu0
        %980 = vdwg.mxu0
        %v981 = vpack.c.bf16 %v978, %v978
        %s982 = scalar_lea.vmem [#allocation5], 4
        %v983 = vld [vmem:[%s982] sm:$0xf]
        %v985 = vsel %vm454, %v981, 0
        %v988 = vsel %vm492, %v983, 0
        %990 = vmatpush.bf16.msra.mxu0 0
        %991 = vmatpush.bf16.msra.mxu0 0
        %992 = vmatpush.bf16.msra.mxu0 0
        %993 = vmatpush.bf16.msra.mxu0 0
        %994 = vmatpush.bf16.msra.mxu0 0
        %995 = vmatpush.bf16.msra.mxu0 0
        %996 = vmatpush.bf16.msra.mxu0 0
        %997 = vmatpush.bf16.msra.mxu0 %v988
        %998 = vmatmul.bf16.gmra.mxu0 %v985
        %v999 = vpop.f32.mrf.mxu0
        %v1000 = vadd.f32 0.0, %v999
        %v1001 = vpop.f32.mrf.mxu0
        %1002 = vdwg.mxu0
        %v1004 = vsel %vm454, %v921, 0
        %v1007 = vsel %vm492, %v922, 0
        %1009 = vmatpush.bf16.msra.mxu0 0
        %1010 = vmatpush.bf16.msra.mxu0 0
        %1011 = vmatpush.bf16.msra.mxu0 0
        %1012 = vmatpush.bf16.msra.mxu0 0
        %1013 = vmatpush.bf16.msra.mxu0 0
        %1014 = vmatpush.bf16.msra.mxu0 0
        %1015 = vmatpush.bf16.msra.mxu0 0
        %1016 = vmatpush.bf16.msra.mxu0 %v1007
        %1017 = vmatmul.bf16.gmra.mxu0 %v1004
        %v1018 = vpop.f32.mrf.mxu0
        %v1019 = vadd.f32 %v1000, %v1018
        %v1020 = vpop.f32.mrf.mxu0
        %1021 = vdwg.mxu0
        %1022 = vrot.lane.b32.xlu0 %v865, 112
        %v1023 = vpop.permute.xlu0 %1022
        %1024 = vrot.lane.b32.xlu0 %v866, 112
        %v1025 = vpop.permute.xlu0 %1024
        %v1027 = vsel %vm454, %v1023, 0
        %v1030 = vsel %vm454, %v1025, 0
        %1032 = vmatpush.bf16.xpose.msra.mxu0 0
        %1033 = vmatpush.bf16.xpose.msra.mxu0 0
        %1034 = vmatpush.bf16.xpose.msra.mxu0 0
        %1035 = vmatpush.bf16.xpose.msra.mxu0 0
        %1036 = vmatpush.bf16.xpose.msra.mxu0 0
        %1037 = vmatpush.bf16.xpose.msra.mxu0 0
        %1038 = vmatpush.bf16.xpose.msra.mxu0 0
        %1039 = vmatpush.bf16.xpose.msra.mxu0 %v1030
        %1040 = vmatmul.bf16.gmra.mxu0 %v1027
        %v1041 = vpop.f32.mrf.mxu0
        %v1042 = vadd.f32 0.0, %v1041
        %v1043 = vpop.f32.mrf.mxu0
        %1044 = vdwg.mxu0
        %v1045 = vsel %vm454, %v1042, -inf
        %1046 = vmax.xlane.f32.xlu0 %v1045
        %v1047 = vpop.xlane.xlu0 %1046
        %v1048 = vsub.f32 %v1042, %v1047
        %v1049 = vmul.f32 %v1048, 1.442695
        %v1050 = vpow.pop %v1049
        %v1051 = vsel %vm454, %v1050, 0.0
        %1052 = vadd.xlane.f32.xlu0 %v1051
        %v1053 = vpop.xlane.xlu0 %1052
        %v1054 = vrcp.pop %v1053
        %v1055 = vmul.f32 %v1050, %v1054
        %v1056 = vpack.c.bf16 %v1055, %v1055
        %1057 = vrot.lane.b32.xlu0 %v867, 80
        %v1058 = vpop.permute.xlu0 %1057
        %v1060 = vsel %vm454, %v1056, 0
        %v1063 = vsel %vm492, %v1058, 0
        %1065 = vmatpush.bf16.msra.mxu0 0
        %1066 = vmatpush.bf16.msra.mxu0 0
        %1067 = vmatpush.bf16.msra.mxu0 0
        %1068 = vmatpush.bf16.msra.mxu0 0
        %1069 = vmatpush.bf16.msra.mxu0 0
        %1070 = vmatpush.bf16.msra.mxu0 0
        %1071 = vmatpush.bf16.msra.mxu0 0
        %1072 = vmatpush.bf16.msra.mxu0 %v1063
        %1073 = vmatmul.bf16.gmra.mxu0 %v1060
        %v1074 = vpop.f32.mrf.mxu0
        %v1075 = vadd.f32 0.0, %v1074
        %v1076 = vpop.f32.mrf.mxu0
        %1077 = vdwg.mxu0
        %v1078 = vpack.c.bf16 %v1075, %v1075
        %s1079 = scalar_lea.vmem [#allocation5], 8
        %v1080 = vld [vmem:[%s1079] sm:$0xf]
        %v1082 = vsel %vm454, %v1078, 0
        %v1085 = vsel %vm492, %v1080, 0
        %1087 = vmatpush.bf16.msra.mxu0 0
        %1088 = vmatpush.bf16.msra.mxu0 0
        %1089 = vmatpush.bf16.msra.mxu0 0
        %1090 = vmatpush.bf16.msra.mxu0 0
        %1091 = vmatpush.bf16.msra.mxu0 0
        %1092 = vmatpush.bf16.msra.mxu0 0
        %1093 = vmatpush.bf16.msra.mxu0 0
        %1094 = vmatpush.bf16.msra.mxu0 %v1085
        %1095 = vmatmul.bf16.gmra.mxu0 %v1082
        %v1096 = vpop.f32.mrf.mxu0
        %v1097 = vadd.f32 0.0, %v1096
        %v1098 = vpop.f32.mrf.mxu0
        %1099 = vdwg.mxu0
        %v1100 = vadd.f32 %v1019, %v1097
        %1101 = vrot.lane.b32.xlu0 %v865, 104
        %v1102 = vpop.permute.xlu0 %1101
        %1103 = vrot.lane.b32.xlu0 %v866, 104
        %v1104 = vpop.permute.xlu0 %1103
        %v1106 = vsel %vm454, %v1102, 0
        %v1109 = vsel %vm454, %v1104, 0
        %1111 = vmatpush.bf16.xpose.msra.mxu0 0
        %1112 = vmatpush.bf16.xpose.msra.mxu0 0
        %1113 = vmatpush.bf16.xpose.msra.mxu0 0
        %1114 = vmatpush.bf16.xpose.msra.mxu0 0
        %1115 = vmatpush.bf16.xpose.msra.mxu0 0
        %1116 = vmatpush.bf16.xpose.msra.mxu0 0
        %1117 = vmatpush.bf16.xpose.msra.mxu0 0
        %1118 = vmatpush.bf16.xpose.msra.mxu0 %v1109
        %1119 = vmatmul.bf16.gmra.mxu0 %v1106
        %v1120 = vpop.f32.mrf.mxu0
        %v1121 = vadd.f32 0.0, %v1120
        %v1122 = vpop.f32.mrf.mxu0
        %1123 = vdwg.mxu0
        %v1124 = vsel %vm454, %v1121, -inf
        %1125 = vmax.xlane.f32.xlu0 %v1124
        %v1126 = vpop.xlane.xlu0 %1125
        %v1127 = vsub.f32 %v1121, %v1126
        %v1128 = vmul.f32 %v1127, 1.442695
        %v1129 = vpow.pop %v1128
        %v1130 = vsel %vm454, %v1129, 0.0
        %1131 = vadd.xlane.f32.xlu0 %v1130
        %v1132 = vpop.xlane.xlu0 %1131
        %v1133 = vrcp.pop %v1132
        %v1134 = vmul.f32 %v1129, %v1133
        %v1135 = vpack.c.bf16 %v1134, %v1134
        %1136 = vrot.lane.b32.xlu0 %v867, 72
        %v1137 = vpop.permute.xlu0 %1136
        %v1139 = vsel %vm454, %v1135, 0
        %v1142 = vsel %vm492, %v1137, 0
        %1144 = vmatpush.bf16.msra.mxu0 0
        %1145 = vmatpush.bf16.msra.mxu0 0
        %1146 = vmatpush.bf16.msra.mxu0 0
        %1147 = vmatpush.bf16.msra.mxu0 0
        %1148 = vmatpush.bf16.msra.mxu0 0
        %1149 = vmatpush.bf16.msra.mxu0 0
        %1150 = vmatpush.bf16.msra.mxu0 0
        %1151 = vmatpush.bf16.msra.mxu0 %v1142
        %1152 = vmatmul.bf16.gmra.mxu0 %v1139
        %v1153 = vpop.f32.mrf.mxu0
        %v1154 = vadd.f32 0.0, %v1153
        %v1155 = vpop.f32.mrf.mxu0
        %1156 = vdwg.mxu0
        %v1157 = vpack.c.bf16 %v1154, %v1154
        %s1158 = scalar_lea.vmem [#allocation5], 12
        %v1159 = vld [vmem:[%s1158] sm:$0xf]
        %v1161 = vsel %vm454, %v1157, 0
        %v1164 = vsel %vm492, %v1159, 0
        %1166 = vmatpush.bf16.msra.mxu0 0
        %1167 = vmatpush.bf16.msra.mxu0 0
        %1168 = vmatpush.bf16.msra.mxu0 0
        %1169 = vmatpush.bf16.msra.mxu0 0
        %1170 = vmatpush.bf16.msra.mxu0 0
        %1171 = vmatpush.bf16.msra.mxu0 0
        %1172 = vmatpush.bf16.msra.mxu0 0
        %1173 = vmatpush.bf16.msra.mxu0 %v1164
        %1174 = vmatmul.bf16.gmra.mxu0 %v1161
        %v1175 = vpop.f32.mrf.mxu0
        %v1176 = vadd.f32 0.0, %v1175
        %v1177 = vpop.f32.mrf.mxu0
        %1178 = vdwg.mxu0
        %v1179 = vadd.f32 %v1100, %v1176
        %v1180 = vperm.slane %v397, 7
        %v1181 = vadd.f32 %v1179, %v1180
        %v1182 = vadd.f32 %v1181, %v802
        %v1183 = vsel %vm416, %v1182, 0.0
        %1184 = vadd.xlane.f32.xlu0 %v1183
        %v1185 = vpop.xlane.xlu0 %1184
        %v1186 = vmul.f32 %v1185, %v779
        %v1187 = vsub.f32 %v1182, %v1186
        %v1188 = vmul.f32 %v1187, %v1187
        %v1189 = vsel %vm416, %v1188, 0.0
        %1190 = vadd.xlane.f32.xlu0 %v1189
        %v1191 = vpop.xlane.xlu0 %1190
        %v1192 = vmul.f32 %v1191, %v779
        %v1193 = vadd.f32 %v1192, 1e-05
        %v1194 = vrsqrt.pop %v1193
        %v1195 = vmul.f32 %v1194, %v1193
        %v1196 = vmul.f32 %v1195, %v1194
        %v1197 = vmul.f32 0.5, %v1196
        %v1198 = vsub.f32 1.5, %v1197
        %v1199 = vmul.f32 %v1194, %v1198
        %vm1200 = vweird.f32 %v1193
        %vm1201 = vweird.f32 %v1194
        %vm1202 = vmor %vm1200, %vm1201
        %v1203 = vsel %vm1202, %v1194, %v1199
        %v1204 = vmul.f32 %v1187, %v1203
        %v1205 = vperm.slane %v398, 2
        %v1206 = vmul.f32 %v1204, %v1205
        %v1207 = vperm.slane %v398, 3
        %v1208 = vadd.f32 %v1206, %v1207
        %v1209 = vpack.c.bf16 %v1208, %v1208
        %v1210 = vld [vmem:[#allocation7] sm:$0xf]
        %v1211 = vld [vmem:[#allocation7 + $0x4] sm:$0xf]
        %v1212 = vld [vmem:[#allocation7 + $0x8] sm:$0xf]
        %v1213 = vld [vmem:[#allocation7 + $0xc] sm:$0xf]
        %v1214 = vld [vmem:[%s8] sm:$0x1]
        %v1216 = vperm.slane %v1214, 0
        %v1222 = vunpack.c.l.b16 %v1210
        %v1223 = vunpack.c.l.b16 %v1211
        %v1224 = vunpack.c.l.b16 %v1212
        %v1225 = vunpack.c.l.b16 %v1213
        %v1226 = vpack.c.b16 %v1223, %v1222
        %v1227 = vpack.c.b16 %v1225, %v1224
        %v1231 = vsel %vm416, %v1209, 0
        %1233 = vmatpush.bf16.msra.mxu0 0
        %1234 = vmatpush.bf16.msra.mxu0 0
        %1235 = vmatpush.bf16.msra.mxu0 0
        %1236 = vmatpush.bf16.msra.mxu0 0
        %1237 = vmatpush.bf16.msra.mxu0 0
        %1238 = vmatpush.bf16.msra.mxu0 0
        %1239 = vmatpush.bf16.msra.mxu0 %v1227
        %1240 = vmatpush.bf16.msra.mxu0 %v1226
        %1241 = vmatmul.bf16.gmra.mxu0 %v1231
        %v1242 = vpop.f32.mrf.mxu0
        %v1243 = vadd.f32 %v1216, %v1242
        %v1244 = vpop.f32.mrf.mxu0
        %1245 = vdwg.mxu0
        %v1246 = vmax.f32 %v1243, 0.0
        %v1247 = vpack.c.bf16 %v1246, %v1246
        %v1248 = vld [vmem:[%s6] sm:$0xf]
        %v1249 = vld [vmem:[%s6 + $0x4] sm:$0xf]
        %v1250 = vld [vmem:[%s6 + $0x8] sm:$0xf]
        %v1251 = vld [vmem:[%s6 + $0xc] sm:$0xf]
        %v1252 = vld [vmem:[%s6 + $0x10] sm:$0xf]
        %v1253 = vld [vmem:[%s6 + $0x14] sm:$0xf]
        %v1254 = vld [vmem:[%s6 + $0x18] sm:$0xf]
        %v1255 = vld [vmem:[%s6 + $0x1c] sm:$0xf]
        %v1256 = vperm.slane %v398, 6
        %v1265 = vunpack.c.l.b16 %v1248
        %v1266 = vunpack.c.l.b16 %v1249
        %v1267 = vunpack.c.l.b16 %v1250
        %v1268 = vunpack.c.l.b16 %v1251
        %v1269 = vunpack.c.l.b16 %v1252
        %v1270 = vunpack.c.l.b16 %v1253
        %v1271 = vunpack.c.l.b16 %v1254
        %v1272 = vunpack.c.l.b16 %v1255
        %v1273 = vpack.c.b16 %v1266, %v1265
        %v1274 = vpack.c.b16 %v1268, %v1267
        %v1275 = vpack.c.b16 %v1270, %v1269
        %v1276 = vpack.c.b16 %v1272, %v1271
        %vm1281 = vcmask 523264
        %v1283 = vsel %vm1281, %v1247, 0
        %1285 = vmatpush.bf16.msra.mxu0 0
        %1286 = vmatpush.bf16.msra.mxu0 0
        %1287 = vmatpush.bf16.msra.mxu0 0
        %1288 = vmatpush.bf16.msra.mxu0 0
        %1289 = vmatpush.bf16.msra.mxu0 %v1276
        %1290 = vmatpush.bf16.msra.mxu0 %v1275
        %1291 = vmatpush.bf16.msra.mxu0 %v1274
        %1292 = vmatpush.bf16.msra.mxu0 %v1273
        %1293 = vmatmul.bf16.gmra.mxu0 %v1283
        %v1294 = vpop.f32.mrf.mxu0
        %v1295 = vadd.f32 %v1256, %v1294
        %v1296 = vpop.f32.mrf.mxu0
        %1297 = vdwg.mxu0
        %v1298 = vadd.f32 %v1295, %v1208
        %v1299 = vsel %vm416, %v1298, 0.0
        %1300 = vadd.xlane.f32.xlu0 %v1299
        %v1301 = vpop.xlane.xlu0 %1300
        %v1302 = vmul.f32 %v1301, %v779
        %v1303 = vsub.f32 %v1298, %v1302
        %v1304 = vmul.f32 %v1303, %v1303
        %v1305 = vsel %vm416, %v1304, 0.0
        %1306 = vadd.xlane.f32.xlu0 %v1305
        %v1307 = vpop.xlane.xlu0 %1306
        %v1308 = vmul.f32 %v1307, %v779
        %v1309 = vadd.f32 %v1308, 1e-05
        %v1310 = vrsqrt.pop %v1309
        %v1311 = vmul.f32 %v1310, %v1309
        %v1312 = vmul.f32 %v1311, %v1310
        %v1313 = vmul.f32 0.5, %v1312
        %v1314 = vsub.f32 1.5, %v1313
        %v1315 = vmul.f32 %v1310, %v1314
        %vm1316 = vweird.f32 %v1309
        %vm1317 = vweird.f32 %v1310
        %vm1318 = vmor %vm1316, %vm1317
        %v1319 = vsel %vm1318, %v1310, %v1315
        %v1320 = vmul.f32 %v1303, %v1319
        %v1321 = vperm.slane %v398, 4
        %v1322 = vmul.f32 %v1320, %v1321
        %v1323 = vperm.slane %v398, 5
        %v1324 = vadd.f32 %v1322, %v1323
        %1325 = vst.msk [vmem:[%s390] sm:$0xff] %vm416, %v1324
        %s1326 = sand.u32 %s228, 1
        %s1327 = scalar_lea.sflag [#allocation4], %s1326
        %s1328 = sand.u32 %s228, 1
        %s1329 = smul.addr %s1328, 8
        %s1330 = scalar_lea.vmem [#allocation10], %s1329
        // Predicated region
        $region73: #{tpu_custom_call.1} parent=55 // pred_check
          %p1331 = pneg %p238
        $region74: #{tpu_custom_call.1} parent=55 // pred_check_branch
          %1333 = sbr.rel (%p1331) target = $region76
        $region75: #{tpu_custom_call.1} parent=55 // pred_region
          %1335 = vsyncadd %s1327, 0
          %s1336 = smul.addr %s26, 8
          %s1337 = scalar_lea.hbm %s9, %s1336
          %s1339 = sshll.u32 %s1330, 4
          %s1340 = int_to_ptr.vmem [resolvable:$true] %s1339
          %s1341 = sshll.u32 %s1337, 4
          %s1342 = int_to_ptr.hbm [resolvable:$true] %s1341
          %1344 = dma.vmem_to_hbm [thread:$0]  %s1340, 128, %s1342, %s1327
        $region76: #{tpu_custom_call.1} parent=55 // pred_fallthru
          _
      $region56: #{tpu_custom_call.1} parent=5 // pred_fallthru
        _
      %p1345 = scmp.le.s32.totalorder 2, %s21
      // Predicated region
      $region77: #{tpu_custom_call.1} parent=5 // pred_check
        %p1346 = pneg %p1345
      $region78: #{tpu_custom_call.1} parent=5 // pred_check_branch
        %1348 = sbr.rel (%p1346) target = $region80
      $region79: #{tpu_custom_call.1} parent=5 // pred_region
        %s1349 = ssub.s32 %s21, 2
        // Predicated region
        $region81: #{tpu_custom_call.1} parent=79 // pred_check
          %p1350 = pneg %p244
        $region82: #{tpu_custom_call.1} parent=79 // pred_check_branch
          %1352 = sbr.rel (%p1350) target = $region84
        $region83: #{tpu_custom_call.1} parent=79 // pred_region
          %s1353 = sand.u32 %s229, 1
          %s1354 = scalar_lea.sflag [#allocation4], %s1353
          %s1355 = sand.u32 %s229, 1
          %s1356 = smul.addr %s1355, 8
          %s1357 = scalar_lea.vmem [#allocation10], %s1356
          %1359 = dma.done %s1354, 128
        $region84: #{tpu_custom_call.1} parent=79 // pred_fallthru
          _
      $region80: #{tpu_custom_call.1} parent=5 // pred_fallthru
        _
    $region6: #{tpu_custom_call.1} parent=1 // loop_footer
      %s25 = sadd.s32 1, %s21
    $region7: #{tpu_custom_call.1} parent=1 // loop_footer_branch
      %20 = sbr.rel target = $region3
    $region8: #{tpu_custom_call.1} parent=1 // loop_exit
      _
    %1360 = vsyncpa [#allocation3], 1
    %s1361 = scalar_lea.sflag [#allocation3], 1
    %1362 = vsyncpa %s1361, 1
    %1363 = vsyncpa [#allocation6], 1
    %1364 = vsyncpa [#allocation9], 1
    %1365 = vsyncpa [#allocation4], 1
    %s1366 = scalar_lea.sflag [#allocation4], 1
    %1367 = vsyncpa %s1366, 1

</llo_original>
